<compile_context>
chip_gen: v7x
topology: tpu7x:2x2x1
jax: 0.10.0
libtpu: 0.0.40
codegen_flags: <defaults>
</compile_context>

<pallas_src>
import functools
import math

import jax
import jax.numpy as jnp
import numpy as np
from jax.experimental import pallas as pl
from jax.experimental.pallas import tpu as pltpu


# ---------------- static tables (glue) ----------------

def partitions(L, k=3):
    """All (p, q, r) with p, q, r >= 0 and p + q + r == L."""
    out = []
    for p in range(L + 1):
        for q in range(L - p + 1):
            out.append((p, q, L - p - q))
    return out


def chebyshev_matrix(lmax):
    Tlm = np.zeros((lmax, lmax), dtype=np.float64)
    for l in range(lmax):
        if l == 0:
            Tlm[l, 0] = 1.0
        elif l == 1:
            Tlm[l, 1] = 1.0
        else:
            Tlm[l] = 2.0 * np.roll(Tlm[l - 1], 1) - Tlm[l - 2]
    return Tlm


def build_pqr_tables(lmax):
    pqrs, pqr_idx = [], []
    for L in range(lmax):
        ps = partitions(L, 3)
        pqrs.extend(ps)
        pqr_idx.extend([L] * len(ps))
    return tuple(pqrs), tuple(pqr_idx)


# ---------------- Pallas kernel ----------------

def takahashi_kernel(pos_ref, post_ref, cnt_ref, pmask_ref, scale_ref, out_ref,
                     *, lmax, nmax, rcut):
    """One group of B crystals (G = B*NTA_per atoms) per grid step.

    pos_ref   : (G, 3)            positions (atoms on sublanes)
    post_ref  : (3, G)            positions transposed (atoms on lanes)
    cnt_ref   : (lmax*nmax, G)    cn^T, row l*nmax + n (atoms on lanes)
    pmask_ref : (G, G)            static pair mask: same crystal AND i != j (1/0)
    scale_ref : (lmax*nmax, 1)    rowsum(Tlm)[l] * rowsum(hop)[n, l]
    out_ref   : (lmax*nmax, G)    lane-dense output (atoms on lanes)
    """
    G = pos_ref.shape[0]
    pos = pos_ref[...]        # (G, 3)
    post = post_ref[...]      # (3, G)

    # Transposed pair matrices: dx[j, i] = pos[j].x - pos[i].x = disp_{i->j}.x
    dx = pos[:, 0:1] - post[0:1, :]          # (G, G)
    dy = pos[:, 1:2] - post[1:2, :]
    dz = pos[:, 2:3] - post[2:3, :]
    d2 = dx * dx + dy * dy + dz * dz

    # neighbor mask: within cutoff AND (same crystal, i != j) from the static
    # block-diagonal pair mask (exact exclusion, no epsilon tricks).
    mask = jnp.logical_and(d2 < rcut * rcut, pmask_ref[...] > 0.5)

    # single rsqrt (EUP) replaces sqrt + divides; unit components feed the
    # angular recurrence below.
    safe_d2 = jnp.where(mask, d2, 1.0)
    inv_d = jax.lax.rsqrt(safe_d2)
    dist = safe_d2 * inv_d
    ux = dx * inv_d
    uy = dy * inv_d
    uz = dz * inv_d

    # cutoff_function: 0.25*(cos(pi d/rcut)+1)^2 == cos^4(pi d / (2 rcut));
    # gauss() in the reference returns ones -> radial factor == 1.
    c = jnp.cos(dist * (math.pi / (2.0 * rcut)))
    c2 = c * c
    w = jnp.where(mask, c2 * c2, 0.0)        # (G, G) masked pair weight

    # Multiply recurrence carrying w*ang directly:
    #   level 0 state = w;  level L state = state_{L-1} * {ux|uy|uz}
    B_list = []          # NO matrices (G, G), in partition order
    levels = []          # level(o) per partition
    prev = {}
    for L in range(lmax):                     # statically unrolled, NO is tiny
        cur = {}
        for (p, q, r) in partitions(L):
            if L == 0:
                val = w
            elif p > 0:
                val = prev[(p - 1, q, r)] * ux
            elif q > 0:
                val = prev[(p, q - 1, r)] * uy
            else:
                val = prev[(p, q, r - 1)] * uz
            cur[(p, q, r)] = val
            B_list.append(val)
            levels.append(L)
        prev = cur

    # Fused MXU matmul: one (lmax*nmax, G) @ (G, NO*G) instead of NO tiny ones.
    # PyTorch index_add over pairs == dense masked matmul over j (w is masked).
    # NOTE: operands kept f32 (bf16 MXU cast risks the 2e-2 tolerance through
    # cancellation before squaring; matmul is small relative to the pair VPU work).
    # TODO(synk): for (B*NTA) >= 256 on v6e/v7x, cast B_cat to bf16 with f32
    #             accumulation and re-validate against the reference.
    B_cat = jnp.concatenate(B_list, axis=1)            # (G, NO*G)
    S = jnp.dot(cnt_ref[...], B_cat, preferred_element_type=jnp.float32)
    S2 = S * S                                          # (lmax*nmax, NO*G)

    # acc[l][n, i] = sum_{o: level(o)==l} (sum_j cn[j,n,l] * w * ang_o)^2
    acc = [None] * lmax
    for o, L in enumerate(levels):
        blk = S2[L * nmax:(L + 1) * nmax, o * G:(o + 1) * G]   # (nmax, G)
        acc[L] = blk if acc[L] is None else acc[L] + blk

    full = jnp.concatenate(acc, axis=0)                 # (lmax*nmax, G)
    out_ref[...] = full * scale_ref[...]


# ---------------- wrapper (glue: parameter gathers, reshapes) ----------------

def _crystals_per_block(NC, NTA_per, target_lanes=128):
    """Pick how many crystals to pack per grid step (lane axis -> ~128)."""
    b = max(1, target_lanes // max(1, NTA_per))
    b = min(b, NC)
    while NC % b != 0:
        b -= 1
    # keep at least 2 grid steps when possible so v7x's 2 TensorCores both work
    while b > 1 and NC // b < 2:
        b -= 1
        while NC % b != 0:
            b -= 1
    return max(1, b)


def takahashi_forward(symbols, positions, cells, pbcs, energyidx, crystalidx,
                      alpha, hopping_params, rcut, nmax, lmax):
    # TODO(synk): neighbor construction ignores cells/pbcs (no periodic images).
    # TODO(synk): loop > 0 self-consistent Gj MLP refinement not implemented
    #             (module default loop = 0, which returns bnl directly).
    # TODO(synk): assumes crystals are contiguous, equal-sized blocks of atoms
    #             (ragged crystalidx would need per-crystal padding/masking).
    # TODO(synk): for much larger group sizes, tile the (G, G) pair matrices
    #             over an i-row grid axis with generation-specific tiles
    #             (~128-256 rows on v7x's 64 MiB VMEM, 256-512 on v5e/v6e) and
    #             raise vmem_limit_bytes accordingly.
    NC = cells.shape[0]
    NTA_total = positions.shape[0]
    NTA_per = NTA_total // NC

    B = _crystals_per_block(NC, NTA_per, target_lanes=128)
    G = B * NTA_per
    num_groups = NC // B

    Tlm = jnp.asarray(chebyshev_matrix(lmax), dtype=jnp.float32)
    cn = alpha[symbols].astype(jnp.float32)                       # (NTA_total, nmax, lmax)
    # cn^T per group: (num_groups, lmax*nmax, G), row = l*nmax + n, lane = atom
    cnT = jnp.transpose(cn.reshape(num_groups, G, nmax, lmax),
                        (0, 3, 2, 1)).reshape(num_groups, lmax * nmax, G)

    # scale[l, n] = rowsum(Tlm)[l] * rowsum_m(hop)[n, l]  (the two trailing reductions)
    scale = jnp.sum(Tlm, axis=1)[:, None] * jnp.transpose(jnp.sum(hopping_params[0], axis=2))
    scale_col = scale.reshape(lmax * nmax, 1).astype(jnp.float32)  # row l*nmax + n

    pos = positions.astype(jnp.float32).reshape(num_groups, G, 3)
    post = jnp.transpose(pos, (0, 2, 1))                           # (num_groups, 3, G)

    # Static per-group block-diagonal pair mask: same crystal AND i != j.
    cid = np.asarray(crystalidx).reshape(num_groups, G)
    pm = (cid[:, :, None] == cid[:, None, :]) & (~np.eye(G, dtype=bool)[None])
    pair_mask = jnp.asarray(pm.astype(np.float32))                 # (num_groups, G, G)

    kernel = functools.partial(takahashi_kernel, lmax=lmax, nmax=nmax, rcut=float(rcut))
    out = pl.pallas_call(
        kernel,
        out_shape=jax.ShapeDtypeStruct((num_groups, lmax * nmax, G), jnp.float32),
        grid=(num_groups,),
        in_specs=[
            pl.BlockSpec((None, G, 3), lambda b: (b, 0, 0)),
            pl.BlockSpec((None, 3, G), lambda b: (b, 0, 0)),
            pl.BlockSpec((None, lmax * nmax, G), lambda b: (b, 0, 0)),
            pl.BlockSpec((None, G, G), lambda b: (b, 0, 0)),
            pl.BlockSpec((lmax * nmax, 1), lambda b: (0, 0)),
        ],
        out_specs=pl.BlockSpec((None, lmax * nmax, G), lambda b: (b, 0, 0)),
        compiler_params=pltpu.CompilerParams(dimension_semantics=("parallel",)),
    )(pos, post, cnT, pair_mask, scale_col)

    # out[g, l*nmax + n, a]  ->  bnl[g*G + a, n, l]
    bnl = jnp.transpose(out, (0, 2, 1)).reshape(num_groups, G, lmax, nmax)
    bnl = jnp.transpose(bnl, (0, 1, 3, 2)).reshape(NTA_total, nmax, lmax)
    return bnl


# ---------------- numpy reference (mirrors the PyTorch pair/index_add code) ----------------

def reference_forward_np(symbols, positions, crystalidx, alpha, hopping_params,
                         rcut, nmax, lmax):
    pqrs, pqr_idx = build_pqr_tables(lmax)
    pqrs = np.array(pqrs)
    pqr_idx = np.array(pqr_idx)
    NO = len(pqr_idx)
    pos = np.asarray(positions, dtype=np.float64)
    sym = np.asarray(symbols)
    cry = np.asarray(crystalidx)
    alpha = np.asarray(alpha, dtype=np.float64)
    hop = np.asarray(hopping_params, dtype=np.float64)[0]
    Tlm = chebyshev_matrix(lmax)
    NTA = pos.shape[0]

    diff = pos[None, :, :] - pos[:, None, :]      # diff[i, j] = pos[j] - pos[i]
    d = np.linalg.norm(diff, axis=-1)
    neigh = (cry[:, None] == cry[None, :]) & (d < rcut) & (~np.eye(NTA, dtype=bool))
    iidx, jidx = np.nonzero(neigh)
    disp = diff[iidx, jidx]
    dist = d[iidx, jidx]
    NN = len(iidx)

    fcut = 0.25 * (np.cos(dist * np.pi / rcut) + 1.0) ** 2
    angular = np.stack(
        [np.prod(disp ** pqr, axis=1) / dist ** np.sum(pqr) for pqr in pqrs], axis=1)  # NN x NO
    # radial (gauss) == ones
    fnr_xyzr = np.broadcast_to((fcut[:, None] * angular)[:, None, :], (NN, nmax, NO))

    cn = alpha[sym]                              # NTA x nmax x lmax
    Cn = cn[jidx][:, :, pqr_idx]                 # NN x nmax x NO
    bnl2 = np.zeros((NTA, nmax, NO))
    np.add.at(bnl2, iidx, Cn * fnr_xyzr)
    bnl2 = bnl2 ** 2
    bnl1 = np.zeros((NTA, nmax, lmax))
    for o in range(NO):
        bnl1[:, :, pqr_idx[o]] += bnl2[:, :, o]
    bnl = np.sum(Tlm[None, None] * bnl1[..., None], axis=3)
    out = np.sum(hop[None] * bnl[..., None], axis=3)
    return out


# ---------------- main ----------------

if __name__ == "__main__":
    key = jax.random.PRNGKey(0)
    nmax, lmax, loop = 2, 2, 0
    species = [0, 1]
    NS = len(species)
    NC = 16              # crystals; 8 packed per grid step -> 128-lane groups, grid=(2,)
    NTA_per = 16         # atoms per crystal
    NTA = NC * NTA_per
    rcut = 6.0

    k1, k2, k3, k4 = jax.random.split(key, 4)
    positions = jax.random.uniform(k1, (NTA, 3), dtype=jnp.float32) * 5.0
    symbols = jax.random.randint(k2, (NTA,), 0, NS)
    cells = jnp.tile(jnp.eye(3, dtype=jnp.float32)[None] * 20.0, (NC, 1, 1))   # NC x 3 x 3
    pbcs = jnp.zeros((NC, 3), dtype=jnp.bool_)
    energyidx = jnp.arange(NC, dtype=jnp.int32)
    crystalidx = jnp.repeat(jnp.arange(NC, dtype=jnp.int32), NTA_per)

    # deterministic parameter init (same shapes as the torch module)
    alpha = jax.random.uniform(k3, (NS, nmax, lmax), dtype=jnp.float32)         # Parameter alpha
    hop_base = jax.random.uniform(k4, (lmax, lmax), dtype=jnp.float32)
    hopping_params = jnp.tile(hop_base[None, None], (loop + 1, nmax, 1, 1))     # Parameter hopping_params
    # mu / sigma parameters exist in the module but gauss() returns ones -> unused.

    bnl = takahashi_forward(symbols, positions, cells, pbcs, energyidx, crystalidx,
                            alpha, hopping_params, rcut, nmax, lmax)
    bnl = jax.block_until_ready(bnl)

    ref = reference_forward_np(np.asarray(symbols), np.asarray(positions),
                               np.asarray(crystalidx), alpha, hopping_params,
                               rcut, nmax, lmax)
    np.testing.assert_allclose(np.asarray(bnl), ref, rtol=2e-2, atol=2e-2)

    print("KERNEL_OK")
</pallas_src>

<mosaic_0001>
module attributes {stable_mosaic.version = 11 : i64} {
  func.func @takahashi_kernel(%arg0: i32, %arg1: memref<1x128x3xf32, #tpu.memory_space<vmem>>, %arg2: memref<1x3x128xf32, #tpu.memory_space<vmem>>, %arg3: memref<1x4x128xf32, #tpu.memory_space<vmem>>, %arg4: memref<1x128x128xf32, #tpu.memory_space<vmem>>, %arg5: memref<4x1xf32, #tpu.memory_space<vmem>>, %arg6: memref<1x4x128xf32, #tpu.memory_space<vmem>>) attributes {dimension_semantics = [#tpu.dimension_semantics<parallel>], iteration_bounds = array<i64: 2>, scalar_prefetch = 0 : i64, scratch_operands = 0 : i64, tpu.core_type = #tpu.core_type<tc>, window_params = [{transform_indices = @transform_0, window_bounds = array<i64: 1, 128, 3>}, {transform_indices = @transform_1, window_bounds = array<i64: 1, 3, 128>}, {transform_indices = @transform_2, window_bounds = array<i64: 1, 4, 128>}, {transform_indices = @transform_3, window_bounds = array<i64: 1, 128, 128>}, {pipeline_mode = #tpu.pipeline_mode<synchronous>, transform_indices = @transform_4, window_bounds = array<i64: 4, 1>}, {transform_indices = @transform_5, window_bounds = array<i64: 1, 4, 128>}]} {
    %c0 = arith.constant 0 : index
    %c0_0 = arith.constant 0 : index
    %c0_1 = arith.constant 0 : index
    %0 = vector.load %arg1[%c0, %c0_0, %c0_1] : memref<1x128x3xf32, #tpu.memory_space<vmem>>, vector<1x128x3xf32>
    %1 = vector.shape_cast %0 : vector<1x128x3xf32> to vector<128x3xf32>
    %c0_2 = arith.constant 0 : index
    %c0_3 = arith.constant 0 : index
    %c0_4 = arith.constant 0 : index
    %2 = vector.load %arg2[%c0_2, %c0_3, %c0_4] : memref<1x3x128xf32, #tpu.memory_space<vmem>>, vector<1x3x128xf32>
    %3 = vector.shape_cast %2 : vector<1x3x128xf32> to vector<3x128xf32>
    %4 = vector.extract_strided_slice %1 {offsets = [0, 0], sizes = [128, 1], strides = [1, 1]} : vector<128x3xf32> to vector<128x1xf32>
    %5 = vector.extract_strided_slice %3 {offsets = [0, 0], sizes = [1, 128], strides = [1, 1]} : vector<3x128xf32> to vector<1x128xf32>
    %6 = vector.broadcast %4 : vector<128x1xf32> to vector<128x128xf32>
    %7 = vector.broadcast %5 : vector<1x128xf32> to vector<128x128xf32>
    %8 = arith.subf %6, %7 : vector<128x128xf32>
    %9 = vector.extract_strided_slice %1 {offsets = [0, 1], sizes = [128, 1], strides = [1, 1]} : vector<128x3xf32> to vector<128x1xf32>
    %10 = vector.extract_strided_slice %3 {offsets = [1, 0], sizes = [1, 128], strides = [1, 1]} : vector<3x128xf32> to vector<1x128xf32>
    %11 = vector.broadcast %9 : vector<128x1xf32> to vector<128x128xf32>
    %12 = vector.broadcast %10 : vector<1x128xf32> to vector<128x128xf32>
    %13 = arith.subf %11, %12 : vector<128x128xf32>
    %14 = vector.extract_strided_slice %1 {offsets = [0, 2], sizes = [128, 1], strides = [1, 1]} : vector<128x3xf32> to vector<128x1xf32>
    %15 = vector.extract_strided_slice %3 {offsets = [2, 0], sizes = [1, 128], strides = [1, 1]} : vector<3x128xf32> to vector<1x128xf32>
    %16 = vector.broadcast %14 : vector<128x1xf32> to vector<128x128xf32>
    %17 = vector.broadcast %15 : vector<1x128xf32> to vector<128x128xf32>
    %18 = arith.subf %16, %17 : vector<128x128xf32>
    %19 = arith.mulf %8, %8 : vector<128x128xf32>
    %20 = arith.mulf %13, %13 : vector<128x128xf32>
    %21 = arith.addf %19, %20 : vector<128x128xf32>
    %22 = arith.mulf %18, %18 : vector<128x128xf32>
    %23 = arith.addf %21, %22 : vector<128x128xf32>
    %cst = arith.constant 3.600000e+01 : f32
    %24 = vector.broadcast %cst : f32 to vector<128x128xf32>
    %25 = arith.cmpf olt, %23, %24 : vector<128x128xf32>
    %c0_5 = arith.constant 0 : index
    %c0_6 = arith.constant 0 : index
    %c0_7 = arith.constant 0 : index
    %26 = vector.load %arg4[%c0_5, %c0_6, %c0_7] : memref<1x128x128xf32, #tpu.memory_space<vmem>>, vector<1x128x128xf32>
    %27 = vector.shape_cast %26 : vector<1x128x128xf32> to vector<128x128xf32>
    %cst_8 = arith.constant 5.000000e-01 : f32
    %28 = vector.broadcast %cst_8 : f32 to vector<128x128xf32>
    %29 = arith.cmpf ogt, %27, %28 : vector<128x128xf32>
    %30 = arith.andi %25, %29 : vector<128x128xi1>
    %cst_9 = arith.constant 1.000000e+00 : f32
    %31 = vector.broadcast %cst_9 : f32 to vector<128x128xf32>
    %32 = arith.select %30, %23, %31 : vector<128x128xi1>, vector<128x128xf32>
    %33 = math.rsqrt %32 : vector<128x128xf32>
    %34 = arith.mulf %32, %33 : vector<128x128xf32>
    %35 = arith.mulf %8, %33 : vector<128x128xf32>
    %36 = arith.mulf %13, %33 : vector<128x128xf32>
    %37 = arith.mulf %18, %33 : vector<128x128xf32>
    %cst_10 = arith.constant 0.261799395 : f32
    %38 = vector.broadcast %cst_10 : f32 to vector<128x128xf32>
    %39 = arith.mulf %34, %38 : vector<128x128xf32>
    %40 = math.cos %39 : vector<128x128xf32>
    %41 = arith.mulf %40, %40 : vector<128x128xf32>
    %42 = arith.mulf %41, %41 : vector<128x128xf32>
    %cst_11 = arith.constant 0.000000e+00 : f32
    %43 = vector.broadcast %cst_11 : f32 to vector<128x128xf32>
    %44 = arith.select %30, %42, %43 : vector<128x128xi1>, vector<128x128xf32>
    %45 = arith.mulf %44, %37 : vector<128x128xf32>
    %46 = arith.mulf %44, %36 : vector<128x128xf32>
    %47 = arith.mulf %44, %35 : vector<128x128xf32>
    %48 = tpu.concatenate %44, %45, %46, %47 in 1 : vector<128x128xf32>, vector<128x128xf32>, vector<128x128xf32>, vector<128x128xf32> -> vector<128x512xf32>
    %c0_12 = arith.constant 0 : index
    %c0_13 = arith.constant 0 : index
    %c0_14 = arith.constant 0 : index
    %49 = vector.load %arg3[%c0_12, %c0_13, %c0_14] : memref<1x4x128xf32, #tpu.memory_space<vmem>>, vector<1x4x128xf32>
    %50 = vector.shape_cast %49 : vector<1x4x128xf32> to vector<4x128xf32>
    %cst_15 = arith.constant dense<0.000000e+00> : vector<4x512xf32>
    %51 = tpu.matmul %50, %48, %cst_15 {dimension_numbers = #tpu.dot_dimension_numbers<[1], [0], [0], [1], [0, 0, 1, 1], [], []>} : vector<4x128xf32>, vector<128x512xf32>, vector<4x512xf32> -> vector<4x512xf32>
    %52 = arith.mulf %51, %51 : vector<4x512xf32>
    %53 = vector.extract_strided_slice %52 {offsets = [0, 0], sizes = [2, 128], strides = [1, 1]} : vector<4x512xf32> to vector<2x128xf32>
    %54 = vector.extract_strided_slice %52 {offsets = [2, 128], sizes = [2, 128], strides = [1, 1]} : vector<4x512xf32> to vector<2x128xf32>
    %55 = vector.extract_strided_slice %52 {offsets = [2, 256], sizes = [2, 128], strides = [1, 1]} : vector<4x512xf32> to vector<2x128xf32>
    %56 = arith.addf %54, %55 : vector<2x128xf32>
    %57 = vector.extract_strided_slice %52 {offsets = [2, 384], sizes = [2, 128], strides = [1, 1]} : vector<4x512xf32> to vector<2x128xf32>
    %58 = arith.addf %56, %57 : vector<2x128xf32>
    %59 = tpu.concatenate %53, %58 in 0 : vector<2x128xf32>, vector<2x128xf32> -> vector<4x128xf32>
    %c0_16 = arith.constant 0 : index
    %c0_17 = arith.constant 0 : index
    %60 = vector.load %arg5[%c0_16, %c0_17] : memref<4x1xf32, #tpu.memory_space<vmem>>, vector<4x1xf32>
    %61 = vector.broadcast %60 : vector<4x1xf32> to vector<4x128xf32>
    %62 = arith.mulf %59, %61 : vector<4x128xf32>
    %c0_18 = arith.constant 0 : index
    %c0_19 = arith.constant 0 : index
    %c0_20 = arith.constant 0 : index
    %63 = vector.load %arg6[%c0_18, %c0_19, %c0_20] : memref<1x4x128xf32, #tpu.memory_space<vmem>>, vector<1x4x128xf32>
    %64 = vector.shape_cast %63 : vector<1x4x128xf32> to vector<4x128xf32>
    %65 = vector.shape_cast %62 : vector<4x128xf32> to vector<1x4x128xf32>
    tpu.vector_store %arg6[%c0_18, %c0_19, %c0_20], %65 {strides = array<i32>} : memref<1x4x128xf32, #tpu.memory_space<vmem>>, vector<1x4x128xf32>,
    return
  }
  func.func @transform_0(%arg0: i32) -> (i32, i32, i32) {
    %c0_i32 = arith.constant 0 : i32
    %c0_i32_0 = arith.constant 0 : i32
    %c0_i32_1 = arith.constant 0 : i32
    return %arg0, %c0_i32, %c0_i32_0 : i32, i32, i32
  }
  func.func @transform_1(%arg0: i32) -> (i32, i32, i32) {
    %c0_i32 = arith.constant 0 : i32
    %c0_i32_0 = arith.constant 0 : i32
    %c0_i32_1 = arith.constant 0 : i32
    return %arg0, %c0_i32, %c0_i32_0 : i32, i32, i32
  }
  func.func @transform_2(%arg0: i32) -> (i32, i32, i32) {
    %c0_i32 = arith.constant 0 : i32
    %c0_i32_0 = arith.constant 0 : i32
    %c0_i32_1 = arith.constant 0 : i32
    return %arg0, %c0_i32, %c0_i32_0 : i32, i32, i32
  }
  func.func @transform_3(%arg0: i32) -> (i32, i32, i32) {
    %c0_i32 = arith.constant 0 : i32
    %c0_i32_0 = arith.constant 0 : i32
    %c0_i32_1 = arith.constant 0 : i32
    return %arg0, %c0_i32, %c0_i32_0 : i32, i32, i32
  }
  func.func @transform_4(%arg0: i32) -> (i32, i32) {
    %c0_i32 = arith.constant 0 : i32
    %c0_i32_0 = arith.constant 0 : i32
    %c0_i32_1 = arith.constant 0 : i32
    return %c0_i32, %c0_i32_0 : i32, i32
  }
  func.func @transform_5(%arg0: i32) -> (i32, i32, i32) {
    %c0_i32 = arith.constant 0 : i32
    %c0_i32_0 = arith.constant 0 : i32
    %c0_i32_1 = arith.constant 0 : i32
    return %arg0, %c0_i32, %c0_i32_0 : i32, i32, i32
  }
}

</mosaic_0001>

<llo_original>
// kernel: tpu_custom_call.1
$region0: #{tpu_custom_call.1}
  #allocation0 [shape = 'u32[]', space=smem, size = 0x4, offset = 0x4, fixed_abs, tag = 'smem constant byte address 0x4 - core index']
  #allocation1 [shape = 'u32[144,128]{1,0:T(1,128)}', space=vmem, size = 0x12000, scoped, tag = 'internal scratch']
  %s0 = inlined_call_operand.vmem [shape: f32[2,128,3], index: 0, kind: input, shape index: {}]
  %s1 = inlined_call_operand.vmem [shape: f32[2,3,128], index: 1, kind: input, shape index: {}]
  %s2 = inlined_call_operand.vmem [shape: f32[2,4,128], index: 2, kind: input, shape index: {}]
  %s3 = inlined_call_operand.vmem [shape: f32[2,128,128], index: 3, kind: input, shape index: {}]
  %s4 = inlined_call_operand.vmem [shape: f32[4,1], index: 4, kind: input, shape index: {}]
  %s5 = inlined_call_operand.hbm [shape: f32[2,4,128], index: 5, kind: output, shape index: {}]
  %s6 = sld [smem:[#allocation0]]
  $region53: #{tpu_custom_call.1} parent=0
    _
  %s8 = ssub.s32 1, %s6
  %s9 = scalar_select 0, %s8, %s6
  $region1: #{tpu_custom_call.1} parent=0
    #allocation2 [shape = 'u8[4096]{0}', space=vmem, size = 0x1000, scoped, tag = 'output window, operand 0']
    #allocation3 [shape = 's32[2]{0}', space=sflag, size = 0x8, scoped, tag = 'scoped memory for tpu_custom_call.1']
    %10 = vsyncpa [#allocation3], 0
    %s11 = scalar_lea.sflag [#allocation3], 1
    %12 = vsyncpa %s11, 0
    loop: start=0, step=1, limit=4
    $region2: #{tpu_custom_call.1} parent=1 // loop_pre_header
      _
    $region3: #{tpu_custom_call.1} parent=1 // loop_header
      %s14 = sphi 0, %s18
      %p15 = scmp.ge.s32.totalorder %s14, 4
      %s24 = sphi 0, %s26
      %s27 = sphi 0, %s24
      %s28 = sphi 0, %s27
      %s44 = sphi 0, %s28
      %s50 = sphi 0, %s52
      %s53 = sphi 0, %s50
      %s54 = sphi 0, %s53
      %s70 = sphi 0, %s54
      %s76 = sphi 0, %s78
      %s79 = sphi 0, %s76
      %s80 = sphi 0, %s79
      %s96 = sphi 0, %s80
      %s102 = sphi 0, %s104
      %s105 = sphi 0, %s102
      %s106 = sphi 0, %s105
      %s122 = sphi 0, %s106
      %s126 = sphi 0, %s126
      %s128 = sphi 0, %s126
      %s129 = sphi 0, %s128
      %s143 = sphi 0, %s129
      %s149 = sphi 0, %s151
      %s152 = sphi 0, %s149
      %s153 = sphi 0, %s152
      %s169 = sphi 0, %s153
    $region4: #{tpu_custom_call.1} parent=1 // loop_header_branch
      %17 = sbr.rel (%p15) target = $region8
    $region5: #{tpu_custom_call.1} parent=1 // loop_body
      %s19 = ssub.s32 %s14, 1
      %s20 = ssub.s32 %s14, 2
      %s21 = sadd.s32 %s14, 1
      %s22 = ssub.s32 %s14, %s21
      %p23 = scmp.eq.s32.totalorder %s22, 0
      %s25 = sadd.s32 %s24, 1
      %s26 = scalar_select %p23, %s24, %s25
      %p29 = pneg %p23
      %p30 = scmp.eq.s32.totalorder %s14, 1
      %p31 = por %p29, %p30
      %p32 = scmp.ne.s32.totalorder %s24, %s27
      %p33 = scmp.eq.s32.totalorder %s14, 0
      %p34 = por %p32, %p33
      %p35 = scmp.ne.s32.totalorder %s24, %s27
      %p36 = scmp.eq.s32.totalorder %s19, 1
      %p37 = por %p35, %p36
      %p38 = scmp.ne.s32.totalorder %s27, %s28
      %p39 = scmp.eq.s32.totalorder %s19, 0
      %p40 = por %p38, %p39
      %p41 = scmp.ne.s32.totalorder %s27, %s28
      %p42 = scmp.eq.s32.totalorder %s20, 1
      %p43 = por %p41, %p42
      %p45 = scmp.ne.s32.totalorder %s28, %s44
      %p46 = scmp.eq.s32.totalorder %s20, 0
      %p47 = por %p45, %p46
      %s48 = ssub.s32 %s14, %s21
      %p49 = scmp.eq.s32.totalorder %s48, 0
      %s51 = sadd.s32 %s50, 1
      %s52 = scalar_select %p49, %s50, %s51
      %p55 = pneg %p49
      %p56 = scmp.eq.s32.totalorder %s14, 1
      %p57 = por %p55, %p56
      %p58 = scmp.ne.s32.totalorder %s50, %s53
      %p59 = scmp.eq.s32.totalorder %s14, 0
      %p60 = por %p58, %p59
      %p61 = scmp.ne.s32.totalorder %s50, %s53
      %p62 = scmp.eq.s32.totalorder %s19, 1
      %p63 = por %p61, %p62
      %p64 = scmp.ne.s32.totalorder %s53, %s54
      %p65 = scmp.eq.s32.totalorder %s19, 0
      %p66 = por %p64, %p65
      %p67 = scmp.ne.s32.totalorder %s53, %s54
      %p68 = scmp.eq.s32.totalorder %s20, 1
      %p69 = por %p67, %p68
      %p71 = scmp.ne.s32.totalorder %s54, %s70
      %p72 = scmp.eq.s32.totalorder %s20, 0
      %p73 = por %p71, %p72
      %s74 = ssub.s32 %s14, %s21
      %p75 = scmp.eq.s32.totalorder %s74, 0
      %s77 = sadd.s32 %s76, 1
      %s78 = scalar_select %p75, %s76, %s77
      %p81 = pneg %p75
      %p82 = scmp.eq.s32.totalorder %s14, 1
      %p83 = por %p81, %p82
      %p84 = scmp.ne.s32.totalorder %s76, %s79
      %p85 = scmp.eq.s32.totalorder %s14, 0
      %p86 = por %p84, %p85
      %p87 = scmp.ne.s32.totalorder %s76, %s79
      %p88 = scmp.eq.s32.totalorder %s19, 1
      %p89 = por %p87, %p88
      %p90 = scmp.ne.s32.totalorder %s79, %s80
      %p91 = scmp.eq.s32.totalorder %s19, 0
      %p92 = por %p90, %p91
      %p93 = scmp.ne.s32.totalorder %s79, %s80
      %p94 = scmp.eq.s32.totalorder %s20, 1
      %p95 = por %p93, %p94
      %p97 = scmp.ne.s32.totalorder %s80, %s96
      %p98 = scmp.eq.s32.totalorder %s20, 0
      %p99 = por %p97, %p98
      %s100 = ssub.s32 %s14, %s21
      %p101 = scmp.eq.s32.totalorder %s100, 0
      %s103 = sadd.s32 %s102, 1
      %s104 = scalar_select %p101, %s102, %s103
      %p107 = pneg %p101
      %p108 = scmp.eq.s32.totalorder %s14, 1
      %p109 = por %p107, %p108
      %p110 = scmp.ne.s32.totalorder %s102, %s105
      %p111 = scmp.eq.s32.totalorder %s14, 0
      %p112 = por %p110, %p111
      %p113 = scmp.ne.s32.totalorder %s102, %s105
      %p114 = scmp.eq.s32.totalorder %s19, 1
      %p115 = por %p113, %p114
      %p116 = scmp.ne.s32.totalorder %s105, %s106
      %p117 = scmp.eq.s32.totalorder %s19, 0
      %p118 = por %p116, %p117
      %p119 = scmp.ne.s32.totalorder %s105, %s106
      %p120 = scmp.eq.s32.totalorder %s20, 1
      %p121 = por %p119, %p120
      %p123 = scmp.ne.s32.totalorder %s106, %s122
      %p124 = scmp.eq.s32.totalorder %s20, 0
      %p125 = por %p123, %p124
      %s127 = sadd.s32 %s126, 1
      %p130 = scmp.eq.s32.totalorder %s14, 1
      %p131 = scmp.ne.s32.totalorder %s126, %s128
      %p132 = scmp.eq.s32.totalorder %s14, 0
      %p133 = por %p131, %p132
      %p134 = scmp.ne.s32.totalorder %s126, %s128
      %p135 = scmp.eq.s32.totalorder %s19, 1
      %p136 = por %p134, %p135
      %p137 = scmp.ne.s32.totalorder %s128, %s129
      %p138 = scmp.eq.s32.totalorder %s19, 0
      %p139 = por %p137, %p138
      %p140 = scmp.ne.s32.totalorder %s128, %s129
      %p141 = scmp.eq.s32.totalorder %s20, 1
      %p142 = por %p140, %p141
      %p144 = scmp.ne.s32.totalorder %s129, %s143
      %p145 = scmp.eq.s32.totalorder %s20, 0
      %p146 = por %p144, %p145
      %s147 = ssub.s32 %s14, %s21
      %p148 = scmp.eq.s32.totalorder %s147, 0
      %s150 = sadd.s32 %s149, 1
      %s151 = scalar_select %p148, %s149, %s150
      %p154 = pneg %p148
      %p155 = scmp.eq.s32.totalorder %s14, 1
      %p156 = por %p154, %p155
      %p157 = scmp.ne.s32.totalorder %s149, %s152
      %p158 = scmp.eq.s32.totalorder %s14, 0
      %p159 = por %p157, %p158
      %p160 = scmp.ne.s32.totalorder %s149, %s152
      %p161 = scmp.eq.s32.totalorder %s19, 1
      %p162 = por %p160, %p161
      %p163 = scmp.ne.s32.totalorder %s152, %s153
      %p164 = scmp.eq.s32.totalorder %s19, 0
      %p165 = por %p163, %p164
      %p166 = scmp.ne.s32.totalorder %s152, %s153
      %p167 = scmp.eq.s32.totalorder %s20, 1
      %p168 = por %p166, %p167
      %p170 = scmp.ne.s32.totalorder %s153, %s169
      %p171 = scmp.eq.s32.totalorder %s20, 0
      %p172 = por %p170, %p171
      %p173 = scmp.le.s32.totalorder 1, %s14
      %p174 = scmp.lt.s32.totalorder %s14, 3
      %p175 = pnand %p173, %p174
      %p176 = pneg %p175
      // Predicated region
      $region9: #{tpu_custom_call.1} parent=5 // pred_check
        _
      $region10: #{tpu_custom_call.1} parent=5 // pred_check_branch
        %178 = sbr.rel (%p175) target = $region12
      $region11: #{tpu_custom_call.1} parent=5 // pred_region
        %s179 = ssub.s32 %s14, 1
        // Predicated region
        $region13: #{tpu_custom_call.1} parent=11 // pred_check
          %p180 = pneg %p139
        $region14: #{tpu_custom_call.1} parent=11 // pred_check_branch
          %182 = sbr.rel (%p180) target = $region16
        $region15: #{tpu_custom_call.1} parent=11 // pred_region
          _
        $region16: #{tpu_custom_call.1} parent=11 // pred_fallthru
          _
      $region12: #{tpu_custom_call.1} parent=5 // pred_fallthru
        _
      %p183 = scmp.lt.s32.totalorder %s14, 2
      // Predicated region
      $region17: #{tpu_custom_call.1} parent=5 // pred_check
        %p184 = pneg %p183
      $region18: #{tpu_custom_call.1} parent=5 // pred_check_branch
        %186 = sbr.rel (%p184) target = $region20
      $region19: #{tpu_custom_call.1} parent=5 // pred_region
        // Predicated region
        $region21: #{tpu_custom_call.1} parent=19 // pred_check
          %p187 = pneg %p34
        $region22: #{tpu_custom_call.1} parent=19 // pred_check_branch
          %189 = sbr.rel (%p187) target = $region24
        $region23: #{tpu_custom_call.1} parent=19 // pred_region
          %p190 = scmp.lt.s32.totalorder %s14, 1
          %s191 = scalar_select %p190, %s14, 1
          %s192 = smul.addr %s191, 16
          %s193 = smul.addr %s192, 8
          %s194 = scalar_lea.vmem %s0, %s193
        $region24: #{tpu_custom_call.1} parent=19 // pred_fallthru
          _
        // Predicated region
        $region25: #{tpu_custom_call.1} parent=19 // pred_check
          %p195 = pneg %p60
        $region26: #{tpu_custom_call.1} parent=19 // pred_check_branch
          %197 = sbr.rel (%p195) target = $region28
        $region27: #{tpu_custom_call.1} parent=19 // pred_region
          %p198 = scmp.lt.s32.totalorder %s14, 1
          %s199 = scalar_select %p198, %s14, 1
          %s200 = smul.addr %s199, 4
          %s201 = scalar_lea.vmem %s1, %s200
        $region28: #{tpu_custom_call.1} parent=19 // pred_fallthru
          _
        // Predicated region
        $region29: #{tpu_custom_call.1} parent=19 // pred_check
          %p202 = pneg %p86
        $region30: #{tpu_custom_call.1} parent=19 // pred_check_branch
          %204 = sbr.rel (%p202) target = $region32
        $region31: #{tpu_custom_call.1} parent=19 // pred_region
          %p205 = scmp.lt.s32.totalorder %s14, 1
          %s206 = scalar_select %p205, %s14, 1
          %s207 = smul.addr %s206, 4
          %s208 = scalar_lea.vmem %s2, %s207
        $region32: #{tpu_custom_call.1} parent=19 // pred_fallthru
          _
        // Predicated region
        $region33: #{tpu_custom_call.1} parent=19 // pred_check
          %p209 = pneg %p112
        $region34: #{tpu_custom_call.1} parent=19 // pred_check_branch
          %211 = sbr.rel (%p209) target = $region36
        $region35: #{tpu_custom_call.1} parent=19 // pred_region
          %p212 = scmp.lt.s32.totalorder %s14, 1
          %s213 = scalar_select %p212, %s14, 1
          %s214 = smul.addr %s213, 16
          %s215 = smul.addr %s214, 8
          %s216 = scalar_lea.vmem %s3, %s215
        $region36: #{tpu_custom_call.1} parent=19 // pred_fallthru
          _
      $region20: #{tpu_custom_call.1} parent=5 // pred_fallthru
        _
      %p217 = scmp.le.s32.totalorder 1, %s14
      %p218 = scmp.lt.s32.totalorder %s14, 3
      %p219 = pnand %p217, %p218
      %p220 = pneg %p219
      // Predicated region
      $region37: #{tpu_custom_call.1} parent=5 // pred_check
        _
      $region38: #{tpu_custom_call.1} parent=5 // pred_check_branch
        %222 = sbr.rel (%p219) target = $region40
      $region39: #{tpu_custom_call.1} parent=5 // pred_region
        %s223 = ssub.s32 %s14, 1
        %p224 = scmp.lt.s32.totalorder %s19, 1
        %s225 = scalar_select %p224, %s19, 1
        %s226 = smul.addr %s225, 16
        %s227 = smul.addr %s226, 8
        %s228 = scalar_lea.vmem %s0, %s227
        %p229 = pneg %p40
        %p230 = pneg %p37
        %p231 = scmp.lt.s32.totalorder %s19, 1
        %s232 = scalar_select %p231, %s19, 1
        %s233 = smul.addr %s232, 4
        %s234 = scalar_lea.vmem %s1, %s233
        %p235 = pneg %p66
        %p236 = pneg %p63
        %p237 = scmp.lt.s32.totalorder %s19, 1
        %s238 = scalar_select %p237, %s19, 1
        %s239 = smul.addr %s238, 4
        %s240 = scalar_lea.vmem %s2, %s239
        %p241 = pneg %p92
        %p242 = pneg %p89
        %p243 = scmp.lt.s32.totalorder %s19, 1
        %s244 = scalar_select %p243, %s19, 1
        %s245 = smul.addr %s244, 16
        %s246 = smul.addr %s245, 8
        %s247 = scalar_lea.vmem %s3, %s246
        %p248 = pneg %p118
        %p249 = pneg %p115
        %p250 = pneg %p139
        %p251 = pneg %p136
        %p252 = pneg %p165
        %p253 = pneg %p162
        %s254 = sand.u32 %s152, 1
        %s255 = scalar_lea.sflag [#allocation3], %s254
        %s256 = sand.u32 %s152, 1
        %s257 = smul.addr %s256, 4
        %s258 = scalar_lea.vmem [#allocation2], %s257
        %p259 = scmp.lt.s32.totalorder %s19, 1
        %s260 = scalar_select %p259, %s19, 1
        %s261 = smul.addr %s260, 16
        %s262 = smul.addr %s261, 8
        %s263 = scalar_lea.vmem %s0, %s262
        %p264 = scmp.lt.s32.totalorder %s19, 1
        %s265 = scalar_select %p264, %s19, 1
        %s266 = smul.addr %s265, 4
        %s267 = scalar_lea.vmem %s1, %s266
        %p268 = scmp.lt.s32.totalorder %s19, 1
        %s269 = scalar_select %p268, %s19, 1
        %s270 = smul.addr %s269, 4
        %s271 = scalar_lea.vmem %s2, %s270
        %p272 = scmp.lt.s32.totalorder %s19, 1
        %s273 = scalar_select %p272, %s19, 1
        %s274 = smul.addr %s273, 16
        %s275 = smul.addr %s274, 8
        %s276 = scalar_lea.vmem %s3, %s275
        %v277 = vld [vmem:[%s263] sm:$0xff]
        %v278 = vld [vmem:[%s263 + $0x8] sm:$0xff]
        %v279 = vld [vmem:[%s263 + $0x10] sm:$0xff]
        %v280 = vld [vmem:[%s263 + $0x18] sm:$0xff]
        %v281 = vld [vmem:[%s263 + $0x20] sm:$0xff]
        %v282 = vld [vmem:[%s263 + $0x28] sm:$0xff]
        %v283 = vld [vmem:[%s263 + $0x30] sm:$0xff]
        %v284 = vld [vmem:[%s263 + $0x38] sm:$0xff]
        %v285 = vld [vmem:[%s263 + $0x40] sm:$0xff]
        %v286 = vld [vmem:[%s263 + $0x48] sm:$0xff]
        %v287 = vld [vmem:[%s263 + $0x50] sm:$0xff]
        %v288 = vld [vmem:[%s263 + $0x58] sm:$0xff]
        %v289 = vld [vmem:[%s263 + $0x60] sm:$0xff]
        %v290 = vld [vmem:[%s263 + $0x68] sm:$0xff]
        %v291 = vld [vmem:[%s263 + $0x70] sm:$0xff]
        %v292 = vld [vmem:[%s263 + $0x78] sm:$0xff]
        %v293 = vld [vmem:[%s267] sm:$0x7]
        %295 = vset.pattern.permute.xlu0 0
        %296 = vperm.xlu0 %295, %v277
        %v297 = vpop.permute.xlu0 %296
        %300 = vset.pattern.permute.xlu0 0
        %301 = vperm.xlu0 %300, %v278
        %v302 = vpop.permute.xlu0 %301
        %305 = vset.pattern.permute.xlu0 0
        %306 = vperm.xlu0 %305, %v279
        %v307 = vpop.permute.xlu0 %306
        %310 = vset.pattern.permute.xlu0 0
        %311 = vperm.xlu0 %310, %v280
        %v312 = vpop.permute.xlu0 %311
        %315 = vset.pattern.permute.xlu0 0
        %316 = vperm.xlu0 %315, %v281
        %v317 = vpop.permute.xlu0 %316
        %320 = vset.pattern.permute.xlu0 0
        %321 = vperm.xlu0 %320, %v282
        %v322 = vpop.permute.xlu0 %321
        %325 = vset.pattern.permute.xlu0 0
        %326 = vperm.xlu0 %325, %v283
        %v327 = vpop.permute.xlu0 %326
        %330 = vset.pattern.permute.xlu0 0
        %331 = vperm.xlu0 %330, %v284
        %v332 = vpop.permute.xlu0 %331
        %335 = vset.pattern.permute.xlu0 0
        %336 = vperm.xlu0 %335, %v285
        %v337 = vpop.permute.xlu0 %336
        %340 = vset.pattern.permute.xlu0 0
        %341 = vperm.xlu0 %340, %v286
        %v342 = vpop.permute.xlu0 %341
        %345 = vset.pattern.permute.xlu0 0
        %346 = vperm.xlu0 %345, %v287
        %v347 = vpop.permute.xlu0 %346
        %350 = vset.pattern.permute.xlu0 0
        %351 = vperm.xlu0 %350, %v288
        %v352 = vpop.permute.xlu0 %351
        %355 = vset.pattern.permute.xlu0 0
        %356 = vperm.xlu0 %355, %v289
        %v357 = vpop.permute.xlu0 %356
        %360 = vset.pattern.permute.xlu0 0
        %361 = vperm.xlu0 %360, %v290
        %v362 = vpop.permute.xlu0 %361
        %365 = vset.pattern.permute.xlu0 0
        %366 = vperm.xlu0 %365, %v291
        %v367 = vpop.permute.xlu0 %366
        %370 = vset.pattern.permute.xlu0 0
        %371 = vperm.xlu0 %370, %v292
        %v372 = vpop.permute.xlu0 %371
        %v374 = vlaneseq
        %v375 = vshrl.u32 %v374, 7
        %v376 = vsub.s32 0, %v375
        %v377 = vrot.slane %v293, %v376
        %v378 = vsub.f32 %v297, %v377
        %v379 = vsub.f32 %v302, %v377
        %v380 = vsub.f32 %v307, %v377
        %v381 = vsub.f32 %v312, %v377
        %v382 = vsub.f32 %v317, %v377
        %v383 = vsub.f32 %v322, %v377
        %v384 = vsub.f32 %v327, %v377
        %v385 = vsub.f32 %v332, %v377
        %v386 = vsub.f32 %v337, %v377
        %v387 = vsub.f32 %v342, %v377
        %v388 = vsub.f32 %v347, %v377
        %v389 = vsub.f32 %v352, %v377
        %v390 = vsub.f32 %v357, %v377
        %v391 = vsub.f32 %v362, %v377
        %v392 = vsub.f32 %v367, %v377
        %v393 = vsub.f32 %v372, %v377
        %394 = vset.pattern.permute.xlu0 1
        %395 = vperm.xlu0 %394, %v277
        %v396 = vpop.permute.xlu0 %395
        %398 = vset.pattern.permute.xlu0 1
        %399 = vperm.xlu0 %398, %v278
        %v400 = vpop.permute.xlu0 %399
        %402 = vset.pattern.permute.xlu0 1
        %403 = vperm.xlu0 %402, %v279
        %v404 = vpop.permute.xlu0 %403
        %406 = vset.pattern.permute.xlu0 1
        %407 = vperm.xlu0 %406, %v280
        %v408 = vpop.permute.xlu0 %407
        %410 = vset.pattern.permute.xlu0 1
        %411 = vperm.xlu0 %410, %v281
        %v412 = vpop.permute.xlu0 %411
        %414 = vset.pattern.permute.xlu0 1
        %415 = vperm.xlu0 %414, %v282
        %v416 = vpop.permute.xlu0 %415
        %418 = vset.pattern.permute.xlu0 1
        %419 = vperm.xlu0 %418, %v283
        %v420 = vpop.permute.xlu0 %419
        %422 = vset.pattern.permute.xlu0 1
        %423 = vperm.xlu0 %422, %v284
        %v424 = vpop.permute.xlu0 %423
        %426 = vset.pattern.permute.xlu0 1
        %427 = vperm.xlu0 %426, %v285
        %v428 = vpop.permute.xlu0 %427
        %430 = vset.pattern.permute.xlu0 1
        %431 = vperm.xlu0 %430, %v286
        %v432 = vpop.permute.xlu0 %431
        %434 = vset.pattern.permute.xlu0 1
        %435 = vperm.xlu0 %434, %v287
        %v436 = vpop.permute.xlu0 %435
        %438 = vset.pattern.permute.xlu0 1
        %439 = vperm.xlu0 %438, %v288
        %v440 = vpop.permute.xlu0 %439
        %442 = vset.pattern.permute.xlu0 1
        %443 = vperm.xlu0 %442, %v289
        %v444 = vpop.permute.xlu0 %443
        %446 = vset.pattern.permute.xlu0 1
        %447 = vperm.xlu0 %446, %v290
        %v448 = vpop.permute.xlu0 %447
        %450 = vset.pattern.permute.xlu0 1
        %451 = vperm.xlu0 %450, %v291
        %v452 = vpop.permute.xlu0 %451
        %454 = vset.pattern.permute.xlu0 1
        %455 = vperm.xlu0 %454, %v292
        %v456 = vpop.permute.xlu0 %455
        %v458 = vlaneseq
        %v459 = vshrl.u32 %v458, 7
        %v460 = vsub.s32 1, %v459
        %v461 = vrot.slane %v293, %v460
        %v462 = vsub.f32 %v396, %v461
        %v463 = vsub.f32 %v400, %v461
        %v464 = vsub.f32 %v404, %v461
        %v465 = vsub.f32 %v408, %v461
        %v466 = vsub.f32 %v412, %v461
        %v467 = vsub.f32 %v416, %v461
        %v468 = vsub.f32 %v420, %v461
        %v469 = vsub.f32 %v424, %v461
        %v470 = vsub.f32 %v428, %v461
        %v471 = vsub.f32 %v432, %v461
        %v472 = vsub.f32 %v436, %v461
        %v473 = vsub.f32 %v440, %v461
        %v474 = vsub.f32 %v444, %v461
        %v475 = vsub.f32 %v448, %v461
        %v476 = vsub.f32 %v452, %v461
        %v477 = vsub.f32 %v456, %v461
        %478 = vset.pattern.permute.xlu0 2
        %479 = vperm.xlu0 %478, %v277
        %v480 = vpop.permute.xlu0 %479
        %482 = vset.pattern.permute.xlu0 2
        %483 = vperm.xlu0 %482, %v278
        %v484 = vpop.permute.xlu0 %483
        %486 = vset.pattern.permute.xlu0 2
        %487 = vperm.xlu0 %486, %v279
        %v488 = vpop.permute.xlu0 %487
        %490 = vset.pattern.permute.xlu0 2
        %491 = vperm.xlu0 %490, %v280
        %v492 = vpop.permute.xlu0 %491
        %494 = vset.pattern.permute.xlu0 2
        %495 = vperm.xlu0 %494, %v281
        %v496 = vpop.permute.xlu0 %495
        %498 = vset.pattern.permute.xlu0 2
        %499 = vperm.xlu0 %498, %v282
        %v500 = vpop.permute.xlu0 %499
        %502 = vset.pattern.permute.xlu0 2
        %503 = vperm.xlu0 %502, %v283
        %v504 = vpop.permute.xlu0 %503
        %506 = vset.pattern.permute.xlu0 2
        %507 = vperm.xlu0 %506, %v284
        %v508 = vpop.permute.xlu0 %507
        %510 = vset.pattern.permute.xlu0 2
        %511 = vperm.xlu0 %510, %v285
        %v512 = vpop.permute.xlu0 %511
        %514 = vset.pattern.permute.xlu0 2
        %515 = vperm.xlu0 %514, %v286
        %v516 = vpop.permute.xlu0 %515
        %518 = vset.pattern.permute.xlu0 2
        %519 = vperm.xlu0 %518, %v287
        %v520 = vpop.permute.xlu0 %519
        %522 = vset.pattern.permute.xlu0 2
        %523 = vperm.xlu0 %522, %v288
        %v524 = vpop.permute.xlu0 %523
        %526 = vset.pattern.permute.xlu0 2
        %527 = vperm.xlu0 %526, %v289
        %v528 = vpop.permute.xlu0 %527
        %530 = vset.pattern.permute.xlu0 2
        %531 = vperm.xlu0 %530, %v290
        %v532 = vpop.permute.xlu0 %531
        %534 = vset.pattern.permute.xlu0 2
        %535 = vperm.xlu0 %534, %v291
        %v536 = vpop.permute.xlu0 %535
        %538 = vset.pattern.permute.xlu0 2
        %539 = vperm.xlu0 %538, %v292
        %v540 = vpop.permute.xlu0 %539
        %v542 = vlaneseq
        %v543 = vshrl.u32 %v542, 7
        %v544 = vsub.s32 2, %v543
        %v545 = vrot.slane %v293, %v544
        %v546 = vsub.f32 %v480, %v545
        %v547 = vsub.f32 %v484, %v545
        %v548 = vsub.f32 %v488, %v545
        %v549 = vsub.f32 %v492, %v545
        %v550 = vsub.f32 %v496, %v545
        %v551 = vsub.f32 %v500, %v545
        %v552 = vsub.f32 %v504, %v545
        %v553 = vsub.f32 %v508, %v545
        %v554 = vsub.f32 %v512, %v545
        %v555 = vsub.f32 %v516, %v545
        %v556 = vsub.f32 %v520, %v545
        %v557 = vsub.f32 %v524, %v545
        %v558 = vsub.f32 %v528, %v545
        %v559 = vsub.f32 %v532, %v545
        %v560 = vsub.f32 %v536, %v545
        %v561 = vsub.f32 %v540, %v545
        %v562 = vmul.f32 %v378, %v378
        %v563 = vmul.f32 %v379, %v379
        %v564 = vmul.f32 %v380, %v380
        %v565 = vmul.f32 %v381, %v381
        %v566 = vmul.f32 %v382, %v382
        %v567 = vmul.f32 %v383, %v383
        %v568 = vmul.f32 %v384, %v384
        %v569 = vmul.f32 %v385, %v385
        %v570 = vmul.f32 %v386, %v386
        %v571 = vmul.f32 %v387, %v387
        %v572 = vmul.f32 %v388, %v388
        %v573 = vmul.f32 %v389, %v389
        %v574 = vmul.f32 %v390, %v390
        %v575 = vmul.f32 %v391, %v391
        %v576 = vmul.f32 %v392, %v392
        %v577 = vmul.f32 %v393, %v393
        %v578 = vmul.f32 %v462, %v462
        %v579 = vmul.f32 %v463, %v463
        %v580 = vmul.f32 %v464, %v464
        %v581 = vmul.f32 %v465, %v465
        %v582 = vmul.f32 %v466, %v466
        %v583 = vmul.f32 %v467, %v467
        %v584 = vmul.f32 %v468, %v468
        %v585 = vmul.f32 %v469, %v469
        %v586 = vmul.f32 %v470, %v470
        %v587 = vmul.f32 %v471, %v471
        %v588 = vmul.f32 %v472, %v472
        %v589 = vmul.f32 %v473, %v473
        %v590 = vmul.f32 %v474, %v474
        %v591 = vmul.f32 %v475, %v475
        %v592 = vmul.f32 %v476, %v476
        %v593 = vmul.f32 %v477, %v477
        %v594 = vadd.f32 %v562, %v578
        %v595 = vadd.f32 %v563, %v579
        %v596 = vadd.f32 %v564, %v580
        %v597 = vadd.f32 %v565, %v581
        %v598 = vadd.f32 %v566, %v582
        %v599 = vadd.f32 %v567, %v583
        %v600 = vadd.f32 %v568, %v584
        %v601 = vadd.f32 %v569, %v585
        %v602 = vadd.f32 %v570, %v586
        %v603 = vadd.f32 %v571, %v587
        %v604 = vadd.f32 %v572, %v588
        %v605 = vadd.f32 %v573, %v589
        %v606 = vadd.f32 %v574, %v590
        %v607 = vadd.f32 %v575, %v591
        %v608 = vadd.f32 %v576, %v592
        %v609 = vadd.f32 %v577, %v593
        %v610 = vmul.f32 %v546, %v546
        %v611 = vmul.f32 %v547, %v547
        %v612 = vmul.f32 %v548, %v548
        %v613 = vmul.f32 %v549, %v549
        %v614 = vmul.f32 %v550, %v550
        %v615 = vmul.f32 %v551, %v551
        %v616 = vmul.f32 %v552, %v552
        %v617 = vmul.f32 %v553, %v553
        %v618 = vmul.f32 %v554, %v554
        %v619 = vmul.f32 %v555, %v555
        %v620 = vmul.f32 %v556, %v556
        %v621 = vmul.f32 %v557, %v557
        %v622 = vmul.f32 %v558, %v558
        %v623 = vmul.f32 %v559, %v559
        %v624 = vmul.f32 %v560, %v560
        %v625 = vmul.f32 %v561, %v561
        %v626 = vadd.f32 %v594, %v610
        %v627 = vadd.f32 %v595, %v611
        %v628 = vadd.f32 %v596, %v612
        %v629 = vadd.f32 %v597, %v613
        %v630 = vadd.f32 %v598, %v614
        %v631 = vadd.f32 %v599, %v615
        %v632 = vadd.f32 %v600, %v616
        %v633 = vadd.f32 %v601, %v617
        %v634 = vadd.f32 %v602, %v618
        %v635 = vadd.f32 %v603, %v619
        %v636 = vadd.f32 %v604, %v620
        %v637 = vadd.f32 %v605, %v621
        %v638 = vadd.f32 %v606, %v622
        %v639 = vadd.f32 %v607, %v623
        %v640 = vadd.f32 %v608, %v624
        %v641 = vadd.f32 %v609, %v625
        %vm642 = vcmp.lt.f32.partialorder %v626, 36.0
        %vm643 = vcmp.lt.f32.partialorder %v627, 36.0
        %vm644 = vcmp.lt.f32.partialorder %v628, 36.0
        %vm645 = vcmp.lt.f32.partialorder %v629, 36.0
        %vm646 = vcmp.lt.f32.partialorder %v630, 36.0
        %vm647 = vcmp.lt.f32.partialorder %v631, 36.0
        %vm648 = vcmp.lt.f32.partialorder %v632, 36.0
        %vm649 = vcmp.lt.f32.partialorder %v633, 36.0
        %vm650 = vcmp.lt.f32.partialorder %v634, 36.0
        %vm651 = vcmp.lt.f32.partialorder %v635, 36.0
        %vm652 = vcmp.lt.f32.partialorder %v636, 36.0
        %vm653 = vcmp.lt.f32.partialorder %v637, 36.0
        %vm654 = vcmp.lt.f32.partialorder %v638, 36.0
        %vm655 = vcmp.lt.f32.partialorder %v639, 36.0
        %vm656 = vcmp.lt.f32.partialorder %v640, 36.0
        %vm657 = vcmp.lt.f32.partialorder %v641, 36.0
        %v658 = vld [vmem:[%s276] sm:$0xff]
        %v659 = vld [vmem:[%s276 + $0x8] sm:$0xff]
        %v660 = vld [vmem:[%s276 + $0x10] sm:$0xff]
        %v661 = vld [vmem:[%s276 + $0x18] sm:$0xff]
        %v662 = vld [vmem:[%s276 + $0x20] sm:$0xff]
        %v663 = vld [vmem:[%s276 + $0x28] sm:$0xff]
        %v664 = vld [vmem:[%s276 + $0x30] sm:$0xff]
        %v665 = vld [vmem:[%s276 + $0x38] sm:$0xff]
        %v666 = vld [vmem:[%s276 + $0x40] sm:$0xff]
        %v667 = vld [vmem:[%s276 + $0x48] sm:$0xff]
        %v668 = vld [vmem:[%s276 + $0x50] sm:$0xff]
        %v669 = vld [vmem:[%s276 + $0x58] sm:$0xff]
        %v670 = vld [vmem:[%s276 + $0x60] sm:$0xff]
        %v671 = vld [vmem:[%s276 + $0x68] sm:$0xff]
        %v672 = vld [vmem:[%s276 + $0x70] sm:$0xff]
        %v673 = vld [vmem:[%s276 + $0x78] sm:$0xff]
        %vm674 = vcmp.gt.f32.partialorder %v658, 0.5
        %vm675 = vcmp.gt.f32.partialorder %v659, 0.5
        %vm676 = vcmp.gt.f32.partialorder %v660, 0.5
        %vm677 = vcmp.gt.f32.partialorder %v661, 0.5
        %vm678 = vcmp.gt.f32.partialorder %v662, 0.5
        %vm679 = vcmp.gt.f32.partialorder %v663, 0.5
        %vm680 = vcmp.gt.f32.partialorder %v664, 0.5
        %vm681 = vcmp.gt.f32.partialorder %v665, 0.5
        %vm682 = vcmp.gt.f32.partialorder %v666, 0.5
        %vm683 = vcmp.gt.f32.partialorder %v667, 0.5
        %vm684 = vcmp.gt.f32.partialorder %v668, 0.5
        %vm685 = vcmp.gt.f32.partialorder %v669, 0.5
        %vm686 = vcmp.gt.f32.partialorder %v670, 0.5
        %vm687 = vcmp.gt.f32.partialorder %v671, 0.5
        %vm688 = vcmp.gt.f32.partialorder %v672, 0.5
        %vm689 = vcmp.gt.f32.partialorder %v673, 0.5
        %vm690 = vmand %vm642, %vm674
        %vm691 = vmand %vm643, %vm675
        %vm692 = vmand %vm644, %vm676
        %vm693 = vmand %vm645, %vm677
        %vm694 = vmand %vm646, %vm678
        %vm695 = vmand %vm647, %vm679
        %vm696 = vmand %vm648, %vm680
        %vm697 = vmand %vm649, %vm681
        %vm698 = vmand %vm650, %vm682
        %vm699 = vmand %vm651, %vm683
        %vm700 = vmand %vm652, %vm684
        %vm701 = vmand %vm653, %vm685
        %vm702 = vmand %vm654, %vm686
        %vm703 = vmand %vm655, %vm687
        %vm704 = vmand %vm656, %vm688
        %vm705 = vmand %vm657, %vm689
        %v706 = vsel %vm690, %v626, 1.0
        %v707 = vsel %vm691, %v627, 1.0
        %v708 = vsel %vm692, %v628, 1.0
        %v709 = vsel %vm693, %v629, 1.0
        %v710 = vsel %vm694, %v630, 1.0
        %v711 = vsel %vm695, %v631, 1.0
        %v712 = vsel %vm696, %v632, 1.0
        %v713 = vsel %vm697, %v633, 1.0
        %v714 = vsel %vm698, %v634, 1.0
        %v715 = vsel %vm699, %v635, 1.0
        %v716 = vsel %vm700, %v636, 1.0
        %v717 = vsel %vm701, %v637, 1.0
        %v718 = vsel %vm702, %v638, 1.0
        %v719 = vsel %vm703, %v639, 1.0
        %v720 = vsel %vm704, %v640, 1.0
        %v721 = vsel %vm705, %v641, 1.0
        %v722 = vrsqrt.pop %v706
        %v723 = vrsqrt.pop %v707
        %v724 = vrsqrt.pop %v708
        %v725 = vrsqrt.pop %v709
        %v726 = vrsqrt.pop %v710
        %v727 = vrsqrt.pop %v711
        %v728 = vrsqrt.pop %v712
        %v729 = vrsqrt.pop %v713
        %v730 = vrsqrt.pop %v714
        %v731 = vrsqrt.pop %v715
        %v732 = vrsqrt.pop %v716
        %v733 = vrsqrt.pop %v717
        %v734 = vrsqrt.pop %v718
        %v735 = vrsqrt.pop %v719
        %v736 = vrsqrt.pop %v720
        %v737 = vrsqrt.pop %v721
        %v738 = vmul.f32 %v706, %v722
        %v739 = vmul.f32 %v707, %v723
        %v740 = vmul.f32 %v708, %v724
        %v741 = vmul.f32 %v709, %v725
        %v742 = vmul.f32 %v710, %v726
        %v743 = vmul.f32 %v711, %v727
        %v744 = vmul.f32 %v712, %v728
        %v745 = vmul.f32 %v713, %v729
        %v746 = vmul.f32 %v714, %v730
        %v747 = vmul.f32 %v715, %v731
        %v748 = vmul.f32 %v716, %v732
        %v749 = vmul.f32 %v717, %v733
        %v750 = vmul.f32 %v718, %v734
        %v751 = vmul.f32 %v719, %v735
        %v752 = vmul.f32 %v720, %v736
        %v753 = vmul.f32 %v721, %v737
        %v754 = vmul.f32 %v378, %v722
        %v755 = vmul.f32 %v379, %v723
        %v756 = vmul.f32 %v380, %v724
        %v757 = vmul.f32 %v381, %v725
        %v758 = vmul.f32 %v382, %v726
        %v759 = vmul.f32 %v383, %v727
        %v760 = vmul.f32 %v384, %v728
        %v761 = vmul.f32 %v385, %v729
        %v762 = vmul.f32 %v386, %v730
        %v763 = vmul.f32 %v387, %v731
        %v764 = vmul.f32 %v388, %v732
        %v765 = vmul.f32 %v389, %v733
        %v766 = vmul.f32 %v390, %v734
        %v767 = vmul.f32 %v391, %v735
        %v768 = vmul.f32 %v392, %v736
        %v769 = vmul.f32 %v393, %v737
        %v770 = vmul.f32 %v462, %v722
        %v771 = vmul.f32 %v463, %v723
        %v772 = vmul.f32 %v464, %v724
        %v773 = vmul.f32 %v465, %v725
        %v774 = vmul.f32 %v466, %v726
        %v775 = vmul.f32 %v467, %v727
        %v776 = vmul.f32 %v468, %v728
        %v777 = vmul.f32 %v469, %v729
        %v778 = vmul.f32 %v470, %v730
        %v779 = vmul.f32 %v471, %v731
        %v780 = vmul.f32 %v472, %v732
        %v781 = vmul.f32 %v473, %v733
        %v782 = vmul.f32 %v474, %v734
        %v783 = vmul.f32 %v475, %v735
        %v784 = vmul.f32 %v476, %v736
        %v785 = vmul.f32 %v477, %v737
        %v786 = vmul.f32 %v546, %v722
        %v787 = vmul.f32 %v547, %v723
        %v788 = vmul.f32 %v548, %v724
        %v789 = vmul.f32 %v549, %v725
        %v790 = vmul.f32 %v550, %v726
        %v791 = vmul.f32 %v551, %v727
        %v792 = vmul.f32 %v552, %v728
        %v793 = vmul.f32 %v553, %v729
        %v794 = vmul.f32 %v554, %v730
        %v795 = vmul.f32 %v555, %v731
        %v796 = vmul.f32 %v556, %v732
        %v797 = vmul.f32 %v557, %v733
        %v798 = vmul.f32 %v558, %v734
        %v799 = vmul.f32 %v559, %v735
        %v800 = vmul.f32 %v560, %v736
        %v801 = vmul.f32 %v561, %v737
        %v802 = vmul.f32 %v738, 0.2617994
        %v803 = vmul.f32 %v739, 0.2617994
        %v804 = vmul.f32 %v740, 0.2617994
        %v805 = vmul.f32 %v741, 0.2617994
        %v806 = vmul.f32 %v742, 0.2617994
        %v807 = vmul.f32 %v743, 0.2617994
        %v808 = vmul.f32 %v744, 0.2617994
        %v809 = vmul.f32 %v745, 0.2617994
        %v810 = vmul.f32 %v746, 0.2617994
        %v811 = vmul.f32 %v747, 0.2617994
        %v812 = vmul.f32 %v748, 0.2617994
        %v813 = vmul.f32 %v749, 0.2617994
        %v814 = vmul.f32 %v750, 0.2617994
        %v815 = vmul.f32 %v751, 0.2617994
        %v816 = vmul.f32 %v752, 0.2617994
        %v817 = vmul.f32 %v753, 0.2617994
        %v818 = vand.u32 2147483647, %v802
        %vm819 = vcmp.le.f32.partialorder %v818, 0.7853982
        %vm820 = vcmp.lt.s32.totalorder %v802, 0
        %v821 = vand.u32 %v802, 2139095040
        %v822 = vshrl.u32 %v821, 23
        %v823 = vsub.s32 %v822, 127
        %v824 = vand.u32 2147483647, %v802
        %v825 = vand.u32 %v824, 8388607
        %v826 = vor.u32 %v825, 8388608
        %v827 = vsub.s32 0, %v826
        %v828 = vadd.s32 %v823, 1
        %vm829 = vcmp.gt.s32.totalorder %v828, 0
        %v830 = vsel %vm829, %v828, 0
        %v831 = vshrl.u32 %v830, 5
        %v832 = vand.u32 %v830, 31
        %v833 = vsub.s32 32, %v832
        %v834 = vshrl.u32 683565275, %v833
        %v835 = vshll.u32 683565275, %v832
        %v836 = vshrl.u32 2475754826, %v833
        %v837 = vor.u32 %v835, %v836
        %v838 = vshll.u32 2475754826, %v832
        %v839 = vshrl.u32 2131351028, %v833
        %v840 = vor.u32 %v838, %v839
        %v841 = vshll.u32 2131351028, %v832
        %v842 = vshrl.u32 2102212464, %v833
        %v843 = vor.u32 %v841, %v842
        %v844 = vshll.u32 2102212464, %v832
        %v845 = vshrl.u32 920167782, %v833
        %v846 = vor.u32 %v844, %v845
        %v847 = vshll.u32 920167782, %v832
        %v848 = vshrl.u32 1326507024, %v833
        %v849 = vor.u32 %v847, %v848
        %vm850 = vcmp.lt.s32.totalorder %v831, 1
        %vm851 = vcmp.lt.s32.totalorder %v831, 2
        %vm852 = vcmp.lt.s32.totalorder %v831, 3
        %vm853 = vcmp.lt.s32.totalorder %v831, 4
        %v854 = vsel %vm850, %v834, %v837
        %v855 = vsel %vm853, %v843, 2102212464
        %v856 = vsel %vm852, %v840, %v855
        %v857 = vsel %vm851, %v854, %v856
        %v858 = vsel %vm850, %v837, %v840
        %v859 = vsel %vm853, %v846, 920167782
        %v860 = vsel %vm852, %v843, %v859
        %v861 = vsel %vm851, %v858, %v860
        %v862 = vsel %vm850, %v840, %v843
        %v863 = vsel %vm853, %v849, 1326507024
        %v864 = vsel %vm852, %v846, %v863
        %v865 = vsel %vm851, %v862, %v864
        %v866 = vshll.u32 %v826, 8
        %v867 = vmul.u32.u64.compose %v866, %v865
        %v868 = vextract.low.u32 %v867
        %v869 = vextract.high.u32 %v867
        %v870 = vmul.u32.u64.compose %v866, %v861
        %v871 = vextract.low.u32 %v870
        %v872 = vextract.high.u32 %v870
        %v873 = vmul.u32 %v866, %v857
        %v874 = vadd.s32 %v869, %v871
        %vm875 = vc.u32 %v869, %v871
        %v876 = vadd.s32 %v872, 1
        %v877 = vsel %vm875, %v876, %v872
        %v878 = vadd.s32 %v873, %v877
        %v879 = vadd.s32 %v878, 536870912
        %v880 = vshrl.u32 %v879, 30
        %v881 = vshll.u32 %v880, 30
        %v882 = vsub.s32 %v878, %v881
        %vm883 = vcmp.lt.s32.totalorder %v882, 0
        %v884 = vsub.s32 0, %v882
        %v885 = vsel %vm883, %v884, %v882
        %v886 = vclz %v885
        %v887 = vsub.s32 %v886, 2
        %vm888 = vcmp.gt.s32.totalorder 0, %v887
        %v889 = vsel %vm888, 0, %v887
        %v890 = vsub.s32 32, %v889
        %v891 = vshll.u32 %v882, %v889
        %v892 = vshrl.u32 %v874, %v890
        %v893 = vor.u32 %v891, %v892
        %v894 = vsub.s32 4294967266, %v889
        %v895 = vadd.s32 %v894, 127
        %v896 = vshll.u32 %v895, 23
        %v897 = vor.u32 4788187, %v896
        %v898 = vand.u32 2147483647, %v897
        %v900 = vcvt.s32.f32 %v893
        %v901 = vmul.f32 %v900, %v898
        %v902 = vxor.u32 %v901, 2147483648
        %v903 = vsel %vm820, %v902, %v901
        %v904 = vsub.s32 4, %v880
        %v905 = vsel %vm820, %v904, %v880
        %v906 = vsel %vm819, %v802, %v903
        %v907 = vsel %vm819, 0, %v905
        %v908 = vcosq.f32.pop %v906
        %v909 = vsinq.f32.pop %v906
        %vm910 = vweird.f32 %v802
        %v911 = vand.u32 %v907, 3
        %vm912 = vcmp.lt.s32.totalorder %v911, 2
        %vm913 = vcmp.eq.s32.totalorder %v911, 0
        %v914 = vxor.u32 %v909, 2147483648
        %v915 = vsel %vm913, %v908, %v914
        %vm916 = vcmp.eq.s32.totalorder %v911, 2
        %v917 = vxor.u32 %v908, 2147483648
        %v918 = vsel %vm916, %v917, %v909
        %v919 = vsel %vm912, %v915, %v918
        %v920 = vsel %vm910, nan, %v919
        %v921 = vand.u32 2147483647, %v803
        %vm922 = vcmp.le.f32.partialorder %v921, 0.7853982
        %vm923 = vcmp.lt.s32.totalorder %v803, 0
        %v924 = vand.u32 %v803, 2139095040
        %v925 = vshrl.u32 %v924, 23
        %v926 = vsub.s32 %v925, 127
        %v927 = vand.u32 2147483647, %v803
        %v928 = vand.u32 %v927, 8388607
        %v929 = vor.u32 %v928, 8388608
        %v930 = vsub.s32 0, %v929
        %v931 = vadd.s32 %v926, 1
        %vm932 = vcmp.gt.s32.totalorder %v931, 0
        %v933 = vsel %vm932, %v931, 0
        %v934 = vshrl.u32 %v933, 5
        %v935 = vand.u32 %v933, 31
        %v936 = vsub.s32 32, %v935
        %v937 = vshrl.u32 683565275, %v936
        %v938 = vshll.u32 683565275, %v935
        %v939 = vshrl.u32 2475754826, %v936
        %v940 = vor.u32 %v938, %v939
        %v941 = vshll.u32 2475754826, %v935
        %v942 = vshrl.u32 2131351028, %v936
        %v943 = vor.u32 %v941, %v942
        %v944 = vshll.u32 2131351028, %v935
        %v945 = vshrl.u32 2102212464, %v936
        %v946 = vor.u32 %v944, %v945
        %v947 = vshll.u32 2102212464, %v935
        %v948 = vshrl.u32 920167782, %v936
        %v949 = vor.u32 %v947, %v948
        %v950 = vshll.u32 920167782, %v935
        %v951 = vshrl.u32 1326507024, %v936
        %v952 = vor.u32 %v950, %v951
        %vm953 = vcmp.lt.s32.totalorder %v934, 1
        %vm954 = vcmp.lt.s32.totalorder %v934, 2
        %vm955 = vcmp.lt.s32.totalorder %v934, 3
        %vm956 = vcmp.lt.s32.totalorder %v934, 4
        %v957 = vsel %vm953, %v937, %v940
        %v958 = vsel %vm956, %v946, 2102212464
        %v959 = vsel %vm955, %v943, %v958
        %v960 = vsel %vm954, %v957, %v959
        %v961 = vsel %vm953, %v940, %v943
        %v962 = vsel %vm956, %v949, 920167782
        %v963 = vsel %vm955, %v946, %v962
        %v964 = vsel %vm954, %v961, %v963
        %v965 = vsel %vm953, %v943, %v946
        %v966 = vsel %vm956, %v952, 1326507024
        %v967 = vsel %vm955, %v949, %v966
        %v968 = vsel %vm954, %v965, %v967
        %v969 = vshll.u32 %v929, 8
        %v970 = vmul.u32.u64.compose %v969, %v968
        %v971 = vextract.low.u32 %v970
        %v972 = vextract.high.u32 %v970
        %v973 = vmul.u32.u64.compose %v969, %v964
        %v974 = vextract.low.u32 %v973
        %v975 = vextract.high.u32 %v973
        %v976 = vmul.u32 %v969, %v960
        %v977 = vadd.s32 %v972, %v974
        %vm978 = vc.u32 %v972, %v974
        %v979 = vadd.s32 %v975, 1
        %v980 = vsel %vm978, %v979, %v975
        %v981 = vadd.s32 %v976, %v980
        %v982 = vadd.s32 %v981, 536870912
        %v983 = vshrl.u32 %v982, 30
        %v984 = vshll.u32 %v983, 30
        %v985 = vsub.s32 %v981, %v984
        %vm986 = vcmp.lt.s32.totalorder %v985, 0
        %v987 = vsub.s32 0, %v985
        %v988 = vsel %vm986, %v987, %v985
        %v989 = vclz %v988
        %v990 = vsub.s32 %v989, 2
        %vm991 = vcmp.gt.s32.totalorder 0, %v990
        %v992 = vsel %vm991, 0, %v990
        %v993 = vsub.s32 32, %v992
        %v994 = vshll.u32 %v985, %v992
        %v995 = vshrl.u32 %v977, %v993
        %v996 = vor.u32 %v994, %v995
        %v997 = vsub.s32 4294967266, %v992
        %v998 = vadd.s32 %v997, 127
        %v999 = vshll.u32 %v998, 23
        %v1000 = vor.u32 4788187, %v999
        %v1001 = vand.u32 2147483647, %v1000
        %v1003 = vcvt.s32.f32 %v996
        %v1004 = vmul.f32 %v1003, %v1001
        %v1005 = vxor.u32 %v1004, 2147483648
        %v1006 = vsel %vm923, %v1005, %v1004
        %v1007 = vsub.s32 4, %v983
        %v1008 = vsel %vm923, %v1007, %v983
        %v1009 = vsel %vm922, %v803, %v1006
        %v1010 = vsel %vm922, 0, %v1008
        %v1011 = vcosq.f32.pop %v1009
        %v1012 = vsinq.f32.pop %v1009
        %vm1013 = vweird.f32 %v803
        %v1014 = vand.u32 %v1010, 3
        %vm1015 = vcmp.lt.s32.totalorder %v1014, 2
        %vm1016 = vcmp.eq.s32.totalorder %v1014, 0
        %v1017 = vxor.u32 %v1012, 2147483648
        %v1018 = vsel %vm1016, %v1011, %v1017
        %vm1019 = vcmp.eq.s32.totalorder %v1014, 2
        %v1020 = vxor.u32 %v1011, 2147483648
        %v1021 = vsel %vm1019, %v1020, %v1012
        %v1022 = vsel %vm1015, %v1018, %v1021
        %v1023 = vsel %vm1013, nan, %v1022
        %v1024 = vand.u32 2147483647, %v804
        %vm1025 = vcmp.le.f32.partialorder %v1024, 0.7853982
        %vm1026 = vcmp.lt.s32.totalorder %v804, 0
        %v1027 = vand.u32 %v804, 2139095040
        %v1028 = vshrl.u32 %v1027, 23
        %v1029 = vsub.s32 %v1028, 127
        %v1030 = vand.u32 2147483647, %v804
        %v1031 = vand.u32 %v1030, 8388607
        %v1032 = vor.u32 %v1031, 8388608
        %v1033 = vsub.s32 0, %v1032
        %v1034 = vadd.s32 %v1029, 1
        %vm1035 = vcmp.gt.s32.totalorder %v1034, 0
        %v1036 = vsel %vm1035, %v1034, 0
        %v1037 = vshrl.u32 %v1036, 5
        %v1038 = vand.u32 %v1036, 31
        %v1039 = vsub.s32 32, %v1038
        %v1040 = vshrl.u32 683565275, %v1039
        %v1041 = vshll.u32 683565275, %v1038
        %v1042 = vshrl.u32 2475754826, %v1039
        %v1043 = vor.u32 %v1041, %v1042
        %v1044 = vshll.u32 2475754826, %v1038
        %v1045 = vshrl.u32 2131351028, %v1039
        %v1046 = vor.u32 %v1044, %v1045
        %v1047 = vshll.u32 2131351028, %v1038
        %v1048 = vshrl.u32 2102212464, %v1039
        %v1049 = vor.u32 %v1047, %v1048
        %v1050 = vshll.u32 2102212464, %v1038
        %v1051 = vshrl.u32 920167782, %v1039
        %v1052 = vor.u32 %v1050, %v1051
        %v1053 = vshll.u32 920167782, %v1038
        %v1054 = vshrl.u32 1326507024, %v1039
        %v1055 = vor.u32 %v1053, %v1054
        %vm1056 = vcmp.lt.s32.totalorder %v1037, 1
        %vm1057 = vcmp.lt.s32.totalorder %v1037, 2
        %vm1058 = vcmp.lt.s32.totalorder %v1037, 3
        %vm1059 = vcmp.lt.s32.totalorder %v1037, 4
        %v1060 = vsel %vm1056, %v1040, %v1043
        %v1061 = vsel %vm1059, %v1049, 2102212464
        %v1062 = vsel %vm1058, %v1046, %v1061
        %v1063 = vsel %vm1057, %v1060, %v1062
        %v1064 = vsel %vm1056, %v1043, %v1046
        %v1065 = vsel %vm1059, %v1052, 920167782
        %v1066 = vsel %vm1058, %v1049, %v1065
        %v1067 = vsel %vm1057, %v1064, %v1066
        %v1068 = vsel %vm1056, %v1046, %v1049
        %v1069 = vsel %vm1059, %v1055, 1326507024
        %v1070 = vsel %vm1058, %v1052, %v1069
        %v1071 = vsel %vm1057, %v1068, %v1070
        %v1072 = vshll.u32 %v1032, 8
        %v1073 = vmul.u32.u64.compose %v1072, %v1071
        %v1074 = vextract.low.u32 %v1073
        %v1075 = vextract.high.u32 %v1073
        %v1076 = vmul.u32.u64.compose %v1072, %v1067
        %v1077 = vextract.low.u32 %v1076
        %v1078 = vextract.high.u32 %v1076
        %v1079 = vmul.u32 %v1072, %v1063
        %v1080 = vadd.s32 %v1075, %v1077
        %vm1081 = vc.u32 %v1075, %v1077
        %v1082 = vadd.s32 %v1078, 1
        %v1083 = vsel %vm1081, %v1082, %v1078
        %v1084 = vadd.s32 %v1079, %v1083
        %v1085 = vadd.s32 %v1084, 536870912
        %v1086 = vshrl.u32 %v1085, 30
        %v1087 = vshll.u32 %v1086, 30
        %v1088 = vsub.s32 %v1084, %v1087
        %vm1089 = vcmp.lt.s32.totalorder %v1088, 0
        %v1090 = vsub.s32 0, %v1088
        %v1091 = vsel %vm1089, %v1090, %v1088
        %v1092 = vclz %v1091
        %v1093 = vsub.s32 %v1092, 2
        %vm1094 = vcmp.gt.s32.totalorder 0, %v1093
        %v1095 = vsel %vm1094, 0, %v1093
        %v1096 = vsub.s32 32, %v1095
        %v1097 = vshll.u32 %v1088, %v1095
        %v1098 = vshrl.u32 %v1080, %v1096
        %v1099 = vor.u32 %v1097, %v1098
        %v1100 = vsub.s32 4294967266, %v1095
        %v1101 = vadd.s32 %v1100, 127
        %v1102 = vshll.u32 %v1101, 23
        %v1103 = vor.u32 4788187, %v1102
        %v1104 = vand.u32 2147483647, %v1103
        %v1106 = vcvt.s32.f32 %v1099
        %v1107 = vmul.f32 %v1106, %v1104
        %v1108 = vxor.u32 %v1107, 2147483648
        %v1109 = vsel %vm1026, %v1108, %v1107
        %v1110 = vsub.s32 4, %v1086
        %v1111 = vsel %vm1026, %v1110, %v1086
        %v1112 = vsel %vm1025, %v804, %v1109
        %v1113 = vsel %vm1025, 0, %v1111
        %v1114 = vcosq.f32.pop %v1112
        %v1115 = vsinq.f32.pop %v1112
        %vm1116 = vweird.f32 %v804
        %v1117 = vand.u32 %v1113, 3
        %vm1118 = vcmp.lt.s32.totalorder %v1117, 2
        %vm1119 = vcmp.eq.s32.totalorder %v1117, 0
        %v1120 = vxor.u32 %v1115, 2147483648
        %v1121 = vsel %vm1119, %v1114, %v1120
        %vm1122 = vcmp.eq.s32.totalorder %v1117, 2
        %v1123 = vxor.u32 %v1114, 2147483648
        %v1124 = vsel %vm1122, %v1123, %v1115
        %v1125 = vsel %vm1118, %v1121, %v1124
        %v1126 = vsel %vm1116, nan, %v1125
        %v1127 = vand.u32 2147483647, %v805
        %vm1128 = vcmp.le.f32.partialorder %v1127, 0.7853982
        %vm1129 = vcmp.lt.s32.totalorder %v805, 0
        %v1130 = vand.u32 %v805, 2139095040
        %v1131 = vshrl.u32 %v1130, 23
        %v1132 = vsub.s32 %v1131, 127
        %v1133 = vand.u32 2147483647, %v805
        %v1134 = vand.u32 %v1133, 8388607
        %v1135 = vor.u32 %v1134, 8388608
        %v1136 = vsub.s32 0, %v1135
        %v1137 = vadd.s32 %v1132, 1
        %vm1138 = vcmp.gt.s32.totalorder %v1137, 0
        %v1139 = vsel %vm1138, %v1137, 0
        %v1140 = vshrl.u32 %v1139, 5
        %v1141 = vand.u32 %v1139, 31
        %v1142 = vsub.s32 32, %v1141
        %v1143 = vshrl.u32 683565275, %v1142
        %v1144 = vshll.u32 683565275, %v1141
        %v1145 = vshrl.u32 2475754826, %v1142
        %v1146 = vor.u32 %v1144, %v1145
        %v1147 = vshll.u32 2475754826, %v1141
        %v1148 = vshrl.u32 2131351028, %v1142
        %v1149 = vor.u32 %v1147, %v1148
        %v1150 = vshll.u32 2131351028, %v1141
        %v1151 = vshrl.u32 2102212464, %v1142
        %v1152 = vor.u32 %v1150, %v1151
        %v1153 = vshll.u32 2102212464, %v1141
        %v1154 = vshrl.u32 920167782, %v1142
        %v1155 = vor.u32 %v1153, %v1154
        %v1156 = vshll.u32 920167782, %v1141
        %v1157 = vshrl.u32 1326507024, %v1142
        %v1158 = vor.u32 %v1156, %v1157
        %vm1159 = vcmp.lt.s32.totalorder %v1140, 1
        %vm1160 = vcmp.lt.s32.totalorder %v1140, 2
        %vm1161 = vcmp.lt.s32.totalorder %v1140, 3
        %vm1162 = vcmp.lt.s32.totalorder %v1140, 4
        %v1163 = vsel %vm1159, %v1143, %v1146
        %v1164 = vsel %vm1162, %v1152, 2102212464
        %v1165 = vsel %vm1161, %v1149, %v1164
        %v1166 = vsel %vm1160, %v1163, %v1165
        %v1167 = vsel %vm1159, %v1146, %v1149
        %v1168 = vsel %vm1162, %v1155, 920167782
        %v1169 = vsel %vm1161, %v1152, %v1168
        %v1170 = vsel %vm1160, %v1167, %v1169
        %v1171 = vsel %vm1159, %v1149, %v1152
        %v1172 = vsel %vm1162, %v1158, 1326507024
        %v1173 = vsel %vm1161, %v1155, %v1172
        %v1174 = vsel %vm1160, %v1171, %v1173
        %v1175 = vshll.u32 %v1135, 8
        %v1176 = vmul.u32.u64.compose %v1175, %v1174
        %v1177 = vextract.low.u32 %v1176
        %v1178 = vextract.high.u32 %v1176
        %v1179 = vmul.u32.u64.compose %v1175, %v1170
        %v1180 = vextract.low.u32 %v1179
        %v1181 = vextract.high.u32 %v1179
        %v1182 = vmul.u32 %v1175, %v1166
        %v1183 = vadd.s32 %v1178, %v1180
        %vm1184 = vc.u32 %v1178, %v1180
        %v1185 = vadd.s32 %v1181, 1
        %v1186 = vsel %vm1184, %v1185, %v1181
        %v1187 = vadd.s32 %v1182, %v1186
        %v1188 = vadd.s32 %v1187, 536870912
        %v1189 = vshrl.u32 %v1188, 30
        %v1190 = vshll.u32 %v1189, 30
        %v1191 = vsub.s32 %v1187, %v1190
        %vm1192 = vcmp.lt.s32.totalorder %v1191, 0
        %v1193 = vsub.s32 0, %v1191
        %v1194 = vsel %vm1192, %v1193, %v1191
        %v1195 = vclz %v1194
        %v1196 = vsub.s32 %v1195, 2
        %vm1197 = vcmp.gt.s32.totalorder 0, %v1196
        %v1198 = vsel %vm1197, 0, %v1196
        %v1199 = vsub.s32 32, %v1198
        %v1200 = vshll.u32 %v1191, %v1198
        %v1201 = vshrl.u32 %v1183, %v1199
        %v1202 = vor.u32 %v1200, %v1201
        %v1203 = vsub.s32 4294967266, %v1198
        %v1204 = vadd.s32 %v1203, 127
        %v1205 = vshll.u32 %v1204, 23
        %v1206 = vor.u32 4788187, %v1205
        %v1207 = vand.u32 2147483647, %v1206
        %v1209 = vcvt.s32.f32 %v1202
        %v1210 = vmul.f32 %v1209, %v1207
        %v1211 = vxor.u32 %v1210, 2147483648
        %v1212 = vsel %vm1129, %v1211, %v1210
        %v1213 = vsub.s32 4, %v1189
        %v1214 = vsel %vm1129, %v1213, %v1189
        %v1215 = vsel %vm1128, %v805, %v1212
        %v1216 = vsel %vm1128, 0, %v1214
        %v1217 = vcosq.f32.pop %v1215
        %v1218 = vsinq.f32.pop %v1215
        %vm1219 = vweird.f32 %v805
        %v1220 = vand.u32 %v1216, 3
        %vm1221 = vcmp.lt.s32.totalorder %v1220, 2
        %vm1222 = vcmp.eq.s32.totalorder %v1220, 0
        %v1223 = vxor.u32 %v1218, 2147483648
        %v1224 = vsel %vm1222, %v1217, %v1223
        %vm1225 = vcmp.eq.s32.totalorder %v1220, 2
        %v1226 = vxor.u32 %v1217, 2147483648
        %v1227 = vsel %vm1225, %v1226, %v1218
        %v1228 = vsel %vm1221, %v1224, %v1227
        %v1229 = vsel %vm1219, nan, %v1228
        %v1230 = vand.u32 2147483647, %v806
        %vm1231 = vcmp.le.f32.partialorder %v1230, 0.7853982
        %vm1232 = vcmp.lt.s32.totalorder %v806, 0
        %v1233 = vand.u32 %v806, 2139095040
        %v1234 = vshrl.u32 %v1233, 23
        %v1235 = vsub.s32 %v1234, 127
        %v1236 = vand.u32 2147483647, %v806
        %v1237 = vand.u32 %v1236, 8388607
        %v1238 = vor.u32 %v1237, 8388608
        %v1239 = vsub.s32 0, %v1238
        %v1240 = vadd.s32 %v1235, 1
        %vm1241 = vcmp.gt.s32.totalorder %v1240, 0
        %v1242 = vsel %vm1241, %v1240, 0
        %v1243 = vshrl.u32 %v1242, 5
        %v1244 = vand.u32 %v1242, 31
        %v1245 = vsub.s32 32, %v1244
        %v1246 = vshrl.u32 683565275, %v1245
        %v1247 = vshll.u32 683565275, %v1244
        %v1248 = vshrl.u32 2475754826, %v1245
        %v1249 = vor.u32 %v1247, %v1248
        %v1250 = vshll.u32 2475754826, %v1244
        %v1251 = vshrl.u32 2131351028, %v1245
        %v1252 = vor.u32 %v1250, %v1251
        %v1253 = vshll.u32 2131351028, %v1244
        %v1254 = vshrl.u32 2102212464, %v1245
        %v1255 = vor.u32 %v1253, %v1254
        %v1256 = vshll.u32 2102212464, %v1244
        %v1257 = vshrl.u32 920167782, %v1245
        %v1258 = vor.u32 %v1256, %v1257
        %v1259 = vshll.u32 920167782, %v1244
        %v1260 = vshrl.u32 1326507024, %v1245
        %v1261 = vor.u32 %v1259, %v1260
        %vm1262 = vcmp.lt.s32.totalorder %v1243, 1
        %vm1263 = vcmp.lt.s32.totalorder %v1243, 2
        %vm1264 = vcmp.lt.s32.totalorder %v1243, 3
        %vm1265 = vcmp.lt.s32.totalorder %v1243, 4
        %v1266 = vsel %vm1262, %v1246, %v1249
        %v1267 = vsel %vm1265, %v1255, 2102212464
        %v1268 = vsel %vm1264, %v1252, %v1267
        %v1269 = vsel %vm1263, %v1266, %v1268
        %v1270 = vsel %vm1262, %v1249, %v1252
        %v1271 = vsel %vm1265, %v1258, 920167782
        %v1272 = vsel %vm1264, %v1255, %v1271
        %v1273 = vsel %vm1263, %v1270, %v1272
        %v1274 = vsel %vm1262, %v1252, %v1255
        %v1275 = vsel %vm1265, %v1261, 1326507024
        %v1276 = vsel %vm1264, %v1258, %v1275
        %v1277 = vsel %vm1263, %v1274, %v1276
        %v1278 = vshll.u32 %v1238, 8
        %v1279 = vmul.u32.u64.compose %v1278, %v1277
        %v1280 = vextract.low.u32 %v1279
        %v1281 = vextract.high.u32 %v1279
        %v1282 = vmul.u32.u64.compose %v1278, %v1273
        %v1283 = vextract.low.u32 %v1282
        %v1284 = vextract.high.u32 %v1282
        %v1285 = vmul.u32 %v1278, %v1269
        %v1286 = vadd.s32 %v1281, %v1283
        %vm1287 = vc.u32 %v1281, %v1283
        %v1288 = vadd.s32 %v1284, 1
        %v1289 = vsel %vm1287, %v1288, %v1284
        %v1290 = vadd.s32 %v1285, %v1289
        %v1291 = vadd.s32 %v1290, 536870912
        %v1292 = vshrl.u32 %v1291, 30
        %v1293 = vshll.u32 %v1292, 30
        %v1294 = vsub.s32 %v1290, %v1293
        %vm1295 = vcmp.lt.s32.totalorder %v1294, 0
        %v1296 = vsub.s32 0, %v1294
        %v1297 = vsel %vm1295, %v1296, %v1294
        %v1298 = vclz %v1297
        %v1299 = vsub.s32 %v1298, 2
        %vm1300 = vcmp.gt.s32.totalorder 0, %v1299
        %v1301 = vsel %vm1300, 0, %v1299
        %v1302 = vsub.s32 32, %v1301
        %v1303 = vshll.u32 %v1294, %v1301
        %v1304 = vshrl.u32 %v1286, %v1302
        %v1305 = vor.u32 %v1303, %v1304
        %v1306 = vsub.s32 4294967266, %v1301
        %v1307 = vadd.s32 %v1306, 127
        %v1308 = vshll.u32 %v1307, 23
        %v1309 = vor.u32 4788187, %v1308
        %v1310 = vand.u32 2147483647, %v1309
        %v1312 = vcvt.s32.f32 %v1305
        %v1313 = vmul.f32 %v1312, %v1310
        %v1314 = vxor.u32 %v1313, 2147483648
        %v1315 = vsel %vm1232, %v1314, %v1313
        %v1316 = vsub.s32 4, %v1292
        %v1317 = vsel %vm1232, %v1316, %v1292
        %v1318 = vsel %vm1231, %v806, %v1315
        %v1319 = vsel %vm1231, 0, %v1317
        %v1320 = vcosq.f32.pop %v1318
        %v1321 = vsinq.f32.pop %v1318
        %vm1322 = vweird.f32 %v806
        %v1323 = vand.u32 %v1319, 3
        %vm1324 = vcmp.lt.s32.totalorder %v1323, 2
        %vm1325 = vcmp.eq.s32.totalorder %v1323, 0
        %v1326 = vxor.u32 %v1321, 2147483648
        %v1327 = vsel %vm1325, %v1320, %v1326
        %vm1328 = vcmp.eq.s32.totalorder %v1323, 2
        %v1329 = vxor.u32 %v1320, 2147483648
        %v1330 = vsel %vm1328, %v1329, %v1321
        %v1331 = vsel %vm1324, %v1327, %v1330
        %v1332 = vsel %vm1322, nan, %v1331
        %v1333 = vand.u32 2147483647, %v807
        %vm1334 = vcmp.le.f32.partialorder %v1333, 0.7853982
        %vm1335 = vcmp.lt.s32.totalorder %v807, 0
        %v1336 = vand.u32 %v807, 2139095040
        %v1337 = vshrl.u32 %v1336, 23
        %v1338 = vsub.s32 %v1337, 127
        %v1339 = vand.u32 2147483647, %v807
        %v1340 = vand.u32 %v1339, 8388607
        %v1341 = vor.u32 %v1340, 8388608
        %v1342 = vsub.s32 0, %v1341
        %v1343 = vadd.s32 %v1338, 1
        %vm1344 = vcmp.gt.s32.totalorder %v1343, 0
        %v1345 = vsel %vm1344, %v1343, 0
        %v1346 = vshrl.u32 %v1345, 5
        %v1347 = vand.u32 %v1345, 31
        %v1348 = vsub.s32 32, %v1347
        %v1349 = vshrl.u32 683565275, %v1348
        %v1350 = vshll.u32 683565275, %v1347
        %v1351 = vshrl.u32 2475754826, %v1348
        %v1352 = vor.u32 %v1350, %v1351
        %v1353 = vshll.u32 2475754826, %v1347
        %v1354 = vshrl.u32 2131351028, %v1348
        %v1355 = vor.u32 %v1353, %v1354
        %v1356 = vshll.u32 2131351028, %v1347
        %v1357 = vshrl.u32 2102212464, %v1348
        %v1358 = vor.u32 %v1356, %v1357
        %v1359 = vshll.u32 2102212464, %v1347
        %v1360 = vshrl.u32 920167782, %v1348
        %v1361 = vor.u32 %v1359, %v1360
        %v1362 = vshll.u32 920167782, %v1347
        %v1363 = vshrl.u32 1326507024, %v1348
        %v1364 = vor.u32 %v1362, %v1363
        %vm1365 = vcmp.lt.s32.totalorder %v1346, 1
        %vm1366 = vcmp.lt.s32.totalorder %v1346, 2
        %vm1367 = vcmp.lt.s32.totalorder %v1346, 3
        %vm1368 = vcmp.lt.s32.totalorder %v1346, 4
        %v1369 = vsel %vm1365, %v1349, %v1352
        %v1370 = vsel %vm1368, %v1358, 2102212464
        %v1371 = vsel %vm1367, %v1355, %v1370
        %v1372 = vsel %vm1366, %v1369, %v1371
        %v1373 = vsel %vm1365, %v1352, %v1355
        %v1374 = vsel %vm1368, %v1361, 920167782
        %v1375 = vsel %vm1367, %v1358, %v1374
        %v1376 = vsel %vm1366, %v1373, %v1375
        %v1377 = vsel %vm1365, %v1355, %v1358
        %v1378 = vsel %vm1368, %v1364, 1326507024
        %v1379 = vsel %vm1367, %v1361, %v1378
        %v1380 = vsel %vm1366, %v1377, %v1379
        %v1381 = vshll.u32 %v1341, 8
        %v1382 = vmul.u32.u64.compose %v1381, %v1380
        %v1383 = vextract.low.u32 %v1382
        %v1384 = vextract.high.u32 %v1382
        %v1385 = vmul.u32.u64.compose %v1381, %v1376
        %v1386 = vextract.low.u32 %v1385
        %v1387 = vextract.high.u32 %v1385
        %v1388 = vmul.u32 %v1381, %v1372
        %v1389 = vadd.s32 %v1384, %v1386
        %vm1390 = vc.u32 %v1384, %v1386
        %v1391 = vadd.s32 %v1387, 1
        %v1392 = vsel %vm1390, %v1391, %v1387
        %v1393 = vadd.s32 %v1388, %v1392
        %v1394 = vadd.s32 %v1393, 536870912
        %v1395 = vshrl.u32 %v1394, 30
        %v1396 = vshll.u32 %v1395, 30
        %v1397 = vsub.s32 %v1393, %v1396
        %vm1398 = vcmp.lt.s32.totalorder %v1397, 0
        %v1399 = vsub.s32 0, %v1397
        %v1400 = vsel %vm1398, %v1399, %v1397
        %v1401 = vclz %v1400
        %v1402 = vsub.s32 %v1401, 2
        %vm1403 = vcmp.gt.s32.totalorder 0, %v1402
        %v1404 = vsel %vm1403, 0, %v1402
        %v1405 = vsub.s32 32, %v1404
        %v1406 = vshll.u32 %v1397, %v1404
        %v1407 = vshrl.u32 %v1389, %v1405
        %v1408 = vor.u32 %v1406, %v1407
        %v1409 = vsub.s32 4294967266, %v1404
        %v1410 = vadd.s32 %v1409, 127
        %v1411 = vshll.u32 %v1410, 23
        %v1412 = vor.u32 4788187, %v1411
        %v1413 = vand.u32 2147483647, %v1412
        %v1415 = vcvt.s32.f32 %v1408
        %v1416 = vmul.f32 %v1415, %v1413
        %v1417 = vxor.u32 %v1416, 2147483648
        %v1418 = vsel %vm1335, %v1417, %v1416
        %v1419 = vsub.s32 4, %v1395
        %v1420 = vsel %vm1335, %v1419, %v1395
        %v1421 = vsel %vm1334, %v807, %v1418
        %v1422 = vsel %vm1334, 0, %v1420
        %v1423 = vcosq.f32.pop %v1421
        %v1424 = vsinq.f32.pop %v1421
        %vm1425 = vweird.f32 %v807
        %v1426 = vand.u32 %v1422, 3
        %vm1427 = vcmp.lt.s32.totalorder %v1426, 2
        %vm1428 = vcmp.eq.s32.totalorder %v1426, 0
        %v1429 = vxor.u32 %v1424, 2147483648
        %v1430 = vsel %vm1428, %v1423, %v1429
        %vm1431 = vcmp.eq.s32.totalorder %v1426, 2
        %v1432 = vxor.u32 %v1423, 2147483648
        %v1433 = vsel %vm1431, %v1432, %v1424
        %v1434 = vsel %vm1427, %v1430, %v1433
        %v1435 = vsel %vm1425, nan, %v1434
        %v1436 = vand.u32 2147483647, %v808
        %vm1437 = vcmp.le.f32.partialorder %v1436, 0.7853982
        %vm1438 = vcmp.lt.s32.totalorder %v808, 0
        %v1439 = vand.u32 %v808, 2139095040
        %v1440 = vshrl.u32 %v1439, 23
        %v1441 = vsub.s32 %v1440, 127
        %v1442 = vand.u32 2147483647, %v808
        %v1443 = vand.u32 %v1442, 8388607
        %v1444 = vor.u32 %v1443, 8388608
        %v1445 = vsub.s32 0, %v1444
        %v1446 = vadd.s32 %v1441, 1
        %vm1447 = vcmp.gt.s32.totalorder %v1446, 0
        %v1448 = vsel %vm1447, %v1446, 0
        %v1449 = vshrl.u32 %v1448, 5
        %v1450 = vand.u32 %v1448, 31
        %v1451 = vsub.s32 32, %v1450
        %v1452 = vshrl.u32 683565275, %v1451
        %v1453 = vshll.u32 683565275, %v1450
        %v1454 = vshrl.u32 2475754826, %v1451
        %v1455 = vor.u32 %v1453, %v1454
        %v1456 = vshll.u32 2475754826, %v1450
        %v1457 = vshrl.u32 2131351028, %v1451
        %v1458 = vor.u32 %v1456, %v1457
        %v1459 = vshll.u32 2131351028, %v1450
        %v1460 = vshrl.u32 2102212464, %v1451
        %v1461 = vor.u32 %v1459, %v1460
        %v1462 = vshll.u32 2102212464, %v1450
        %v1463 = vshrl.u32 920167782, %v1451
        %v1464 = vor.u32 %v1462, %v1463
        %v1465 = vshll.u32 920167782, %v1450
        %v1466 = vshrl.u32 1326507024, %v1451
        %v1467 = vor.u32 %v1465, %v1466
        %vm1468 = vcmp.lt.s32.totalorder %v1449, 1
        %vm1469 = vcmp.lt.s32.totalorder %v1449, 2
        %vm1470 = vcmp.lt.s32.totalorder %v1449, 3
        %vm1471 = vcmp.lt.s32.totalorder %v1449, 4
        %v1472 = vsel %vm1468, %v1452, %v1455
        %v1473 = vsel %vm1471, %v1461, 2102212464
        %v1474 = vsel %vm1470, %v1458, %v1473
        %v1475 = vsel %vm1469, %v1472, %v1474
        %v1476 = vsel %vm1468, %v1455, %v1458
        %v1477 = vsel %vm1471, %v1464, 920167782
        %v1478 = vsel %vm1470, %v1461, %v1477
        %v1479 = vsel %vm1469, %v1476, %v1478
        %v1480 = vsel %vm1468, %v1458, %v1461
        %v1481 = vsel %vm1471, %v1467, 1326507024
        %v1482 = vsel %vm1470, %v1464, %v1481
        %v1483 = vsel %vm1469, %v1480, %v1482
        %v1484 = vshll.u32 %v1444, 8
        %v1485 = vmul.u32.u64.compose %v1484, %v1483
        %v1486 = vextract.low.u32 %v1485
        %v1487 = vextract.high.u32 %v1485
        %v1488 = vmul.u32.u64.compose %v1484, %v1479
        %v1489 = vextract.low.u32 %v1488
        %v1490 = vextract.high.u32 %v1488
        %v1491 = vmul.u32 %v1484, %v1475
        %v1492 = vadd.s32 %v1487, %v1489
        %vm1493 = vc.u32 %v1487, %v1489
        %v1494 = vadd.s32 %v1490, 1
        %v1495 = vsel %vm1493, %v1494, %v1490
        %v1496 = vadd.s32 %v1491, %v1495
        %v1497 = vadd.s32 %v1496, 536870912
        %v1498 = vshrl.u32 %v1497, 30
        %v1499 = vshll.u32 %v1498, 30
        %v1500 = vsub.s32 %v1496, %v1499
        %vm1501 = vcmp.lt.s32.totalorder %v1500, 0
        %v1502 = vsub.s32 0, %v1500
        %v1503 = vsel %vm1501, %v1502, %v1500
        %v1504 = vclz %v1503
        %v1505 = vsub.s32 %v1504, 2
        %vm1506 = vcmp.gt.s32.totalorder 0, %v1505
        %v1507 = vsel %vm1506, 0, %v1505
        %v1508 = vsub.s32 32, %v1507
        %v1509 = vshll.u32 %v1500, %v1507
        %v1510 = vshrl.u32 %v1492, %v1508
        %v1511 = vor.u32 %v1509, %v1510
        %v1512 = vsub.s32 4294967266, %v1507
        %v1513 = vadd.s32 %v1512, 127
        %v1514 = vshll.u32 %v1513, 23
        %v1515 = vor.u32 4788187, %v1514
        %v1516 = vand.u32 2147483647, %v1515
        %v1518 = vcvt.s32.f32 %v1511
        %v1519 = vmul.f32 %v1518, %v1516
        %v1520 = vxor.u32 %v1519, 2147483648
        %v1521 = vsel %vm1438, %v1520, %v1519
        %v1522 = vsub.s32 4, %v1498
        %v1523 = vsel %vm1438, %v1522, %v1498
        %v1524 = vsel %vm1437, %v808, %v1521
        %v1525 = vsel %vm1437, 0, %v1523
        %v1526 = vcosq.f32.pop %v1524
        %v1527 = vsinq.f32.pop %v1524
        %vm1528 = vweird.f32 %v808
        %v1529 = vand.u32 %v1525, 3
        %vm1530 = vcmp.lt.s32.totalorder %v1529, 2
        %vm1531 = vcmp.eq.s32.totalorder %v1529, 0
        %v1532 = vxor.u32 %v1527, 2147483648
        %v1533 = vsel %vm1531, %v1526, %v1532
        %vm1534 = vcmp.eq.s32.totalorder %v1529, 2
        %v1535 = vxor.u32 %v1526, 2147483648
        %v1536 = vsel %vm1534, %v1535, %v1527
        %v1537 = vsel %vm1530, %v1533, %v1536
        %v1538 = vsel %vm1528, nan, %v1537
        %v1539 = vand.u32 2147483647, %v809
        %vm1540 = vcmp.le.f32.partialorder %v1539, 0.7853982
        %vm1541 = vcmp.lt.s32.totalorder %v809, 0
        %v1542 = vand.u32 %v809, 2139095040
        %v1543 = vshrl.u32 %v1542, 23
        %v1544 = vsub.s32 %v1543, 127
        %v1545 = vand.u32 2147483647, %v809
        %v1546 = vand.u32 %v1545, 8388607
        %v1547 = vor.u32 %v1546, 8388608
        %v1548 = vsub.s32 0, %v1547
        %v1549 = vadd.s32 %v1544, 1
        %vm1550 = vcmp.gt.s32.totalorder %v1549, 0
        %v1551 = vsel %vm1550, %v1549, 0
        %v1552 = vshrl.u32 %v1551, 5
        %v1553 = vand.u32 %v1551, 31
        %v1554 = vsub.s32 32, %v1553
        %v1555 = vshrl.u32 683565275, %v1554
        %v1556 = vshll.u32 683565275, %v1553
        %v1557 = vshrl.u32 2475754826, %v1554
        %v1558 = vor.u32 %v1556, %v1557
        %v1559 = vshll.u32 2475754826, %v1553
        %v1560 = vshrl.u32 2131351028, %v1554
        %v1561 = vor.u32 %v1559, %v1560
        %v1562 = vshll.u32 2131351028, %v1553
        %v1563 = vshrl.u32 2102212464, %v1554
        %v1564 = vor.u32 %v1562, %v1563
        %v1565 = vshll.u32 2102212464, %v1553
        %v1566 = vshrl.u32 920167782, %v1554
        %v1567 = vor.u32 %v1565, %v1566
        %v1568 = vshll.u32 920167782, %v1553
        %v1569 = vshrl.u32 1326507024, %v1554
        %v1570 = vor.u32 %v1568, %v1569
        %vm1571 = vcmp.lt.s32.totalorder %v1552, 1
        %vm1572 = vcmp.lt.s32.totalorder %v1552, 2
        %vm1573 = vcmp.lt.s32.totalorder %v1552, 3
        %vm1574 = vcmp.lt.s32.totalorder %v1552, 4
        %v1575 = vsel %vm1571, %v1555, %v1558
        %v1576 = vsel %vm1574, %v1564, 2102212464
        %v1577 = vsel %vm1573, %v1561, %v1576
        %v1578 = vsel %vm1572, %v1575, %v1577
        %v1579 = vsel %vm1571, %v1558, %v1561
        %v1580 = vsel %vm1574, %v1567, 920167782
        %v1581 = vsel %vm1573, %v1564, %v1580
        %v1582 = vsel %vm1572, %v1579, %v1581
        %v1583 = vsel %vm1571, %v1561, %v1564
        %v1584 = vsel %vm1574, %v1570, 1326507024
        %v1585 = vsel %vm1573, %v1567, %v1584
        %v1586 = vsel %vm1572, %v1583, %v1585
        %v1587 = vshll.u32 %v1547, 8
        %v1588 = vmul.u32.u64.compose %v1587, %v1586
        %v1589 = vextract.low.u32 %v1588
        %v1590 = vextract.high.u32 %v1588
        %v1591 = vmul.u32.u64.compose %v1587, %v1582
        %v1592 = vextract.low.u32 %v1591
        %v1593 = vextract.high.u32 %v1591
        %v1594 = vmul.u32 %v1587, %v1578
        %v1595 = vadd.s32 %v1590, %v1592
        %vm1596 = vc.u32 %v1590, %v1592
        %v1597 = vadd.s32 %v1593, 1
        %v1598 = vsel %vm1596, %v1597, %v1593
        %v1599 = vadd.s32 %v1594, %v1598
        %v1600 = vadd.s32 %v1599, 536870912
        %v1601 = vshrl.u32 %v1600, 30
        %v1602 = vshll.u32 %v1601, 30
        %v1603 = vsub.s32 %v1599, %v1602
        %vm1604 = vcmp.lt.s32.totalorder %v1603, 0
        %v1605 = vsub.s32 0, %v1603
        %v1606 = vsel %vm1604, %v1605, %v1603
        %v1607 = vclz %v1606
        %v1608 = vsub.s32 %v1607, 2
        %vm1609 = vcmp.gt.s32.totalorder 0, %v1608
        %v1610 = vsel %vm1609, 0, %v1608
        %v1611 = vsub.s32 32, %v1610
        %v1612 = vshll.u32 %v1603, %v1610
        %v1613 = vshrl.u32 %v1595, %v1611
        %v1614 = vor.u32 %v1612, %v1613
        %v1615 = vsub.s32 4294967266, %v1610
        %v1616 = vadd.s32 %v1615, 127
        %v1617 = vshll.u32 %v1616, 23
        %v1618 = vor.u32 4788187, %v1617
        %v1619 = vand.u32 2147483647, %v1618
        %v1621 = vcvt.s32.f32 %v1614
        %v1622 = vmul.f32 %v1621, %v1619
        %v1623 = vxor.u32 %v1622, 2147483648
        %v1624 = vsel %vm1541, %v1623, %v1622
        %v1625 = vsub.s32 4, %v1601
        %v1626 = vsel %vm1541, %v1625, %v1601
        %v1627 = vsel %vm1540, %v809, %v1624
        %v1628 = vsel %vm1540, 0, %v1626
        %v1629 = vcosq.f32.pop %v1627
        %v1630 = vsinq.f32.pop %v1627
        %vm1631 = vweird.f32 %v809
        %v1632 = vand.u32 %v1628, 3
        %vm1633 = vcmp.lt.s32.totalorder %v1632, 2
        %vm1634 = vcmp.eq.s32.totalorder %v1632, 0
        %v1635 = vxor.u32 %v1630, 2147483648
        %v1636 = vsel %vm1634, %v1629, %v1635
        %vm1637 = vcmp.eq.s32.totalorder %v1632, 2
        %v1638 = vxor.u32 %v1629, 2147483648
        %v1639 = vsel %vm1637, %v1638, %v1630
        %v1640 = vsel %vm1633, %v1636, %v1639
        %v1641 = vsel %vm1631, nan, %v1640
        %v1642 = vand.u32 2147483647, %v810
        %vm1643 = vcmp.le.f32.partialorder %v1642, 0.7853982
        %vm1644 = vcmp.lt.s32.totalorder %v810, 0
        %v1645 = vand.u32 %v810, 2139095040
        %v1646 = vshrl.u32 %v1645, 23
        %v1647 = vsub.s32 %v1646, 127
        %v1648 = vand.u32 2147483647, %v810
        %v1649 = vand.u32 %v1648, 8388607
        %v1650 = vor.u32 %v1649, 8388608
        %v1651 = vsub.s32 0, %v1650
        %v1652 = vadd.s32 %v1647, 1
        %vm1653 = vcmp.gt.s32.totalorder %v1652, 0
        %v1654 = vsel %vm1653, %v1652, 0
        %v1655 = vshrl.u32 %v1654, 5
        %v1656 = vand.u32 %v1654, 31
        %v1657 = vsub.s32 32, %v1656
        %v1658 = vshrl.u32 683565275, %v1657
        %v1659 = vshll.u32 683565275, %v1656
        %v1660 = vshrl.u32 2475754826, %v1657
        %v1661 = vor.u32 %v1659, %v1660
        %v1662 = vshll.u32 2475754826, %v1656
        %v1663 = vshrl.u32 2131351028, %v1657
        %v1664 = vor.u32 %v1662, %v1663
        %v1665 = vshll.u32 2131351028, %v1656
        %v1666 = vshrl.u32 2102212464, %v1657
        %v1667 = vor.u32 %v1665, %v1666
        %v1668 = vshll.u32 2102212464, %v1656
        %v1669 = vshrl.u32 920167782, %v1657
        %v1670 = vor.u32 %v1668, %v1669
        %v1671 = vshll.u32 920167782, %v1656
        %v1672 = vshrl.u32 1326507024, %v1657
        %v1673 = vor.u32 %v1671, %v1672
        %vm1674 = vcmp.lt.s32.totalorder %v1655, 1
        %vm1675 = vcmp.lt.s32.totalorder %v1655, 2
        %vm1676 = vcmp.lt.s32.totalorder %v1655, 3
        %vm1677 = vcmp.lt.s32.totalorder %v1655, 4
        %v1678 = vsel %vm1674, %v1658, %v1661
        %v1679 = vsel %vm1677, %v1667, 2102212464
        %v1680 = vsel %vm1676, %v1664, %v1679
        %v1681 = vsel %vm1675, %v1678, %v1680
        %v1682 = vsel %vm1674, %v1661, %v1664
        %v1683 = vsel %vm1677, %v1670, 920167782
        %v1684 = vsel %vm1676, %v1667, %v1683
        %v1685 = vsel %vm1675, %v1682, %v1684
        %v1686 = vsel %vm1674, %v1664, %v1667
        %v1687 = vsel %vm1677, %v1673, 1326507024
        %v1688 = vsel %vm1676, %v1670, %v1687
        %v1689 = vsel %vm1675, %v1686, %v1688
        %v1690 = vshll.u32 %v1650, 8
        %v1691 = vmul.u32.u64.compose %v1690, %v1689
        %v1692 = vextract.low.u32 %v1691
        %v1693 = vextract.high.u32 %v1691
        %v1694 = vmul.u32.u64.compose %v1690, %v1685
        %v1695 = vextract.low.u32 %v1694
        %v1696 = vextract.high.u32 %v1694
        %v1697 = vmul.u32 %v1690, %v1681
        %v1698 = vadd.s32 %v1693, %v1695
        %vm1699 = vc.u32 %v1693, %v1695
        %v1700 = vadd.s32 %v1696, 1
        %v1701 = vsel %vm1699, %v1700, %v1696
        %v1702 = vadd.s32 %v1697, %v1701
        %v1703 = vadd.s32 %v1702, 536870912
        %v1704 = vshrl.u32 %v1703, 30
        %v1705 = vshll.u32 %v1704, 30
        %v1706 = vsub.s32 %v1702, %v1705
        %vm1707 = vcmp.lt.s32.totalorder %v1706, 0
        %v1708 = vsub.s32 0, %v1706
        %v1709 = vsel %vm1707, %v1708, %v1706
        %v1710 = vclz %v1709
        %v1711 = vsub.s32 %v1710, 2
        %vm1712 = vcmp.gt.s32.totalorder 0, %v1711
        %v1713 = vsel %vm1712, 0, %v1711
        %v1714 = vsub.s32 32, %v1713
        %v1715 = vshll.u32 %v1706, %v1713
        %v1716 = vshrl.u32 %v1698, %v1714
        %v1717 = vor.u32 %v1715, %v1716
        %v1718 = vsub.s32 4294967266, %v1713
        %v1719 = vadd.s32 %v1718, 127
        %v1720 = vshll.u32 %v1719, 23
        %v1721 = vor.u32 4788187, %v1720
        %v1722 = vand.u32 2147483647, %v1721
        %v1724 = vcvt.s32.f32 %v1717
        %v1725 = vmul.f32 %v1724, %v1722
        %v1726 = vxor.u32 %v1725, 2147483648
        %v1727 = vsel %vm1644, %v1726, %v1725
        %v1728 = vsub.s32 4, %v1704
        %v1729 = vsel %vm1644, %v1728, %v1704
        %v1730 = vsel %vm1643, %v810, %v1727
        %v1731 = vsel %vm1643, 0, %v1729
        %v1732 = vcosq.f32.pop %v1730
        %v1733 = vsinq.f32.pop %v1730
        %vm1734 = vweird.f32 %v810
        %v1735 = vand.u32 %v1731, 3
        %vm1736 = vcmp.lt.s32.totalorder %v1735, 2
        %vm1737 = vcmp.eq.s32.totalorder %v1735, 0
        %v1738 = vxor.u32 %v1733, 2147483648
        %v1739 = vsel %vm1737, %v1732, %v1738
        %vm1740 = vcmp.eq.s32.totalorder %v1735, 2
        %v1741 = vxor.u32 %v1732, 2147483648
        %v1742 = vsel %vm1740, %v1741, %v1733
        %v1743 = vsel %vm1736, %v1739, %v1742
        %v1744 = vsel %vm1734, nan, %v1743
        %v1745 = vand.u32 2147483647, %v811
        %vm1746 = vcmp.le.f32.partialorder %v1745, 0.7853982
        %vm1747 = vcmp.lt.s32.totalorder %v811, 0
        %v1748 = vand.u32 %v811, 2139095040
        %v1749 = vshrl.u32 %v1748, 23
        %v1750 = vsub.s32 %v1749, 127
        %v1751 = vand.u32 2147483647, %v811
        %v1752 = vand.u32 %v1751, 8388607
        %v1753 = vor.u32 %v1752, 8388608
        %v1754 = vsub.s32 0, %v1753
        %v1755 = vadd.s32 %v1750, 1
        %vm1756 = vcmp.gt.s32.totalorder %v1755, 0
        %v1757 = vsel %vm1756, %v1755, 0
        %v1758 = vshrl.u32 %v1757, 5
        %v1759 = vand.u32 %v1757, 31
        %v1760 = vsub.s32 32, %v1759
        %v1761 = vshrl.u32 683565275, %v1760
        %v1762 = vshll.u32 683565275, %v1759
        %v1763 = vshrl.u32 2475754826, %v1760
        %v1764 = vor.u32 %v1762, %v1763
        %v1765 = vshll.u32 2475754826, %v1759
        %v1766 = vshrl.u32 2131351028, %v1760
        %v1767 = vor.u32 %v1765, %v1766
        %v1768 = vshll.u32 2131351028, %v1759
        %v1769 = vshrl.u32 2102212464, %v1760
        %v1770 = vor.u32 %v1768, %v1769
        %v1771 = vshll.u32 2102212464, %v1759
        %v1772 = vshrl.u32 920167782, %v1760
        %v1773 = vor.u32 %v1771, %v1772
        %v1774 = vshll.u32 920167782, %v1759
        %v1775 = vshrl.u32 1326507024, %v1760
        %v1776 = vor.u32 %v1774, %v1775
        %vm1777 = vcmp.lt.s32.totalorder %v1758, 1
        %vm1778 = vcmp.lt.s32.totalorder %v1758, 2
        %vm1779 = vcmp.lt.s32.totalorder %v1758, 3
        %vm1780 = vcmp.lt.s32.totalorder %v1758, 4
        %v1781 = vsel %vm1777, %v1761, %v1764
        %v1782 = vsel %vm1780, %v1770, 2102212464
        %v1783 = vsel %vm1779, %v1767, %v1782
        %v1784 = vsel %vm1778, %v1781, %v1783
        %v1785 = vsel %vm1777, %v1764, %v1767
        %v1786 = vsel %vm1780, %v1773, 920167782
        %v1787 = vsel %vm1779, %v1770, %v1786
        %v1788 = vsel %vm1778, %v1785, %v1787
        %v1789 = vsel %vm1777, %v1767, %v1770
        %v1790 = vsel %vm1780, %v1776, 1326507024
        %v1791 = vsel %vm1779, %v1773, %v1790
        %v1792 = vsel %vm1778, %v1789, %v1791
        %v1793 = vshll.u32 %v1753, 8
        %v1794 = vmul.u32.u64.compose %v1793, %v1792
        %v1795 = vextract.low.u32 %v1794
        %v1796 = vextract.high.u32 %v1794
        %v1797 = vmul.u32.u64.compose %v1793, %v1788
        %v1798 = vextract.low.u32 %v1797
        %v1799 = vextract.high.u32 %v1797
        %v1800 = vmul.u32 %v1793, %v1784
        %v1801 = vadd.s32 %v1796, %v1798
        %vm1802 = vc.u32 %v1796, %v1798
        %v1803 = vadd.s32 %v1799, 1
        %v1804 = vsel %vm1802, %v1803, %v1799
        %v1805 = vadd.s32 %v1800, %v1804
        %v1806 = vadd.s32 %v1805, 536870912
        %v1807 = vshrl.u32 %v1806, 30
        %v1808 = vshll.u32 %v1807, 30
        %v1809 = vsub.s32 %v1805, %v1808
        %vm1810 = vcmp.lt.s32.totalorder %v1809, 0
        %v1811 = vsub.s32 0, %v1809
        %v1812 = vsel %vm1810, %v1811, %v1809
        %v1813 = vclz %v1812
        %v1814 = vsub.s32 %v1813, 2
        %vm1815 = vcmp.gt.s32.totalorder 0, %v1814
        %v1816 = vsel %vm1815, 0, %v1814
        %v1817 = vsub.s32 32, %v1816
        %v1818 = vshll.u32 %v1809, %v1816
        %v1819 = vshrl.u32 %v1801, %v1817
        %v1820 = vor.u32 %v1818, %v1819
        %v1821 = vsub.s32 4294967266, %v1816
        %v1822 = vadd.s32 %v1821, 127
        %v1823 = vshll.u32 %v1822, 23
        %v1824 = vor.u32 4788187, %v1823
        %v1825 = vand.u32 2147483647, %v1824
        %v1827 = vcvt.s32.f32 %v1820
        %v1828 = vmul.f32 %v1827, %v1825
        %v1829 = vxor.u32 %v1828, 2147483648
        %v1830 = vsel %vm1747, %v1829, %v1828
        %v1831 = vsub.s32 4, %v1807
        %v1832 = vsel %vm1747, %v1831, %v1807
        %v1833 = vsel %vm1746, %v811, %v1830
        %v1834 = vsel %vm1746, 0, %v1832
        %v1835 = vcosq.f32.pop %v1833
        %v1836 = vsinq.f32.pop %v1833
        %vm1837 = vweird.f32 %v811
        %v1838 = vand.u32 %v1834, 3
        %vm1839 = vcmp.lt.s32.totalorder %v1838, 2
        %vm1840 = vcmp.eq.s32.totalorder %v1838, 0
        %v1841 = vxor.u32 %v1836, 2147483648
        %v1842 = vsel %vm1840, %v1835, %v1841
        %vm1843 = vcmp.eq.s32.totalorder %v1838, 2
        %v1844 = vxor.u32 %v1835, 2147483648
        %v1845 = vsel %vm1843, %v1844, %v1836
        %v1846 = vsel %vm1839, %v1842, %v1845
        %v1847 = vsel %vm1837, nan, %v1846
        %v1848 = vand.u32 2147483647, %v812
        %vm1849 = vcmp.le.f32.partialorder %v1848, 0.7853982
        %vm1850 = vcmp.lt.s32.totalorder %v812, 0
        %v1851 = vand.u32 %v812, 2139095040
        %v1852 = vshrl.u32 %v1851, 23
        %v1853 = vsub.s32 %v1852, 127
        %v1854 = vand.u32 2147483647, %v812
        %v1855 = vand.u32 %v1854, 8388607
        %v1856 = vor.u32 %v1855, 8388608
        %v1857 = vsub.s32 0, %v1856
        %v1858 = vadd.s32 %v1853, 1
        %vm1859 = vcmp.gt.s32.totalorder %v1858, 0
        %v1860 = vsel %vm1859, %v1858, 0
        %v1861 = vshrl.u32 %v1860, 5
        %v1862 = vand.u32 %v1860, 31
        %v1863 = vsub.s32 32, %v1862
        %v1864 = vshrl.u32 683565275, %v1863
        %v1865 = vshll.u32 683565275, %v1862
        %v1866 = vshrl.u32 2475754826, %v1863
        %v1867 = vor.u32 %v1865, %v1866
        %v1868 = vshll.u32 2475754826, %v1862
        %v1869 = vshrl.u32 2131351028, %v1863
        %v1870 = vor.u32 %v1868, %v1869
        %v1871 = vshll.u32 2131351028, %v1862
        %v1872 = vshrl.u32 2102212464, %v1863
        %v1873 = vor.u32 %v1871, %v1872
        %v1874 = vshll.u32 2102212464, %v1862
        %v1875 = vshrl.u32 920167782, %v1863
        %v1876 = vor.u32 %v1874, %v1875
        %v1877 = vshll.u32 920167782, %v1862
        %v1878 = vshrl.u32 1326507024, %v1863
        %v1879 = vor.u32 %v1877, %v1878
        %vm1880 = vcmp.lt.s32.totalorder %v1861, 1
        %vm1881 = vcmp.lt.s32.totalorder %v1861, 2
        %vm1882 = vcmp.lt.s32.totalorder %v1861, 3
        %vm1883 = vcmp.lt.s32.totalorder %v1861, 4
        %v1884 = vsel %vm1880, %v1864, %v1867
        %v1885 = vsel %vm1883, %v1873, 2102212464
        %v1886 = vsel %vm1882, %v1870, %v1885
        %v1887 = vsel %vm1881, %v1884, %v1886
        %v1888 = vsel %vm1880, %v1867, %v1870
        %v1889 = vsel %vm1883, %v1876, 920167782
        %v1890 = vsel %vm1882, %v1873, %v1889
        %v1891 = vsel %vm1881, %v1888, %v1890
        %v1892 = vsel %vm1880, %v1870, %v1873
        %v1893 = vsel %vm1883, %v1879, 1326507024
        %v1894 = vsel %vm1882, %v1876, %v1893
        %v1895 = vsel %vm1881, %v1892, %v1894
        %v1896 = vshll.u32 %v1856, 8
        %v1897 = vmul.u32.u64.compose %v1896, %v1895
        %v1898 = vextract.low.u32 %v1897
        %v1899 = vextract.high.u32 %v1897
        %v1900 = vmul.u32.u64.compose %v1896, %v1891
        %v1901 = vextract.low.u32 %v1900
        %v1902 = vextract.high.u32 %v1900
        %v1903 = vmul.u32 %v1896, %v1887
        %v1904 = vadd.s32 %v1899, %v1901
        %vm1905 = vc.u32 %v1899, %v1901
        %v1906 = vadd.s32 %v1902, 1
        %v1907 = vsel %vm1905, %v1906, %v1902
        %v1908 = vadd.s32 %v1903, %v1907
        %v1909 = vadd.s32 %v1908, 536870912
        %v1910 = vshrl.u32 %v1909, 30
        %v1911 = vshll.u32 %v1910, 30
        %v1912 = vsub.s32 %v1908, %v1911
        %vm1913 = vcmp.lt.s32.totalorder %v1912, 0
        %v1914 = vsub.s32 0, %v1912
        %v1915 = vsel %vm1913, %v1914, %v1912
        %v1916 = vclz %v1915
        %v1917 = vsub.s32 %v1916, 2
        %vm1918 = vcmp.gt.s32.totalorder 0, %v1917
        %v1919 = vsel %vm1918, 0, %v1917
        %v1920 = vsub.s32 32, %v1919
        %v1921 = vshll.u32 %v1912, %v1919
        %v1922 = vshrl.u32 %v1904, %v1920
        %v1923 = vor.u32 %v1921, %v1922
        %v1924 = vsub.s32 4294967266, %v1919
        %v1925 = vadd.s32 %v1924, 127
        %v1926 = vshll.u32 %v1925, 23
        %v1927 = vor.u32 4788187, %v1926
        %v1928 = vand.u32 2147483647, %v1927
        %v1930 = vcvt.s32.f32 %v1923
        %v1931 = vmul.f32 %v1930, %v1928
        %v1932 = vxor.u32 %v1931, 2147483648
        %v1933 = vsel %vm1850, %v1932, %v1931
        %v1934 = vsub.s32 4, %v1910
        %v1935 = vsel %vm1850, %v1934, %v1910
        %v1936 = vsel %vm1849, %v812, %v1933
        %v1937 = vsel %vm1849, 0, %v1935
        %v1938 = vcosq.f32.pop %v1936
        %v1939 = vsinq.f32.pop %v1936
        %vm1940 = vweird.f32 %v812
        %v1941 = vand.u32 %v1937, 3
        %vm1942 = vcmp.lt.s32.totalorder %v1941, 2
        %vm1943 = vcmp.eq.s32.totalorder %v1941, 0
        %v1944 = vxor.u32 %v1939, 2147483648
        %v1945 = vsel %vm1943, %v1938, %v1944
        %vm1946 = vcmp.eq.s32.totalorder %v1941, 2
        %v1947 = vxor.u32 %v1938, 2147483648
        %v1948 = vsel %vm1946, %v1947, %v1939
        %v1949 = vsel %vm1942, %v1945, %v1948
        %v1950 = vsel %vm1940, nan, %v1949
        %v1951 = vand.u32 2147483647, %v813
        %vm1952 = vcmp.le.f32.partialorder %v1951, 0.7853982
        %vm1953 = vcmp.lt.s32.totalorder %v813, 0
        %v1954 = vand.u32 %v813, 2139095040
        %v1955 = vshrl.u32 %v1954, 23
        %v1956 = vsub.s32 %v1955, 127
        %v1957 = vand.u32 2147483647, %v813
        %v1958 = vand.u32 %v1957, 8388607
        %v1959 = vor.u32 %v1958, 8388608
        %v1960 = vsub.s32 0, %v1959
        %v1961 = vadd.s32 %v1956, 1
        %vm1962 = vcmp.gt.s32.totalorder %v1961, 0
        %v1963 = vsel %vm1962, %v1961, 0
        %v1964 = vshrl.u32 %v1963, 5
        %v1965 = vand.u32 %v1963, 31
        %v1966 = vsub.s32 32, %v1965
        %v1967 = vshrl.u32 683565275, %v1966
        %v1968 = vshll.u32 683565275, %v1965
        %v1969 = vshrl.u32 2475754826, %v1966
        %v1970 = vor.u32 %v1968, %v1969
        %v1971 = vshll.u32 2475754826, %v1965
        %v1972 = vshrl.u32 2131351028, %v1966
        %v1973 = vor.u32 %v1971, %v1972
        %v1974 = vshll.u32 2131351028, %v1965
        %v1975 = vshrl.u32 2102212464, %v1966
        %v1976 = vor.u32 %v1974, %v1975
        %v1977 = vshll.u32 2102212464, %v1965
        %v1978 = vshrl.u32 920167782, %v1966
        %v1979 = vor.u32 %v1977, %v1978
        %v1980 = vshll.u32 920167782, %v1965
        %v1981 = vshrl.u32 1326507024, %v1966
        %v1982 = vor.u32 %v1980, %v1981
        %vm1983 = vcmp.lt.s32.totalorder %v1964, 1
        %vm1984 = vcmp.lt.s32.totalorder %v1964, 2
        %vm1985 = vcmp.lt.s32.totalorder %v1964, 3
        %vm1986 = vcmp.lt.s32.totalorder %v1964, 4
        %v1987 = vsel %vm1983, %v1967, %v1970
        %v1988 = vsel %vm1986, %v1976, 2102212464
        %v1989 = vsel %vm1985, %v1973, %v1988
        %v1990 = vsel %vm1984, %v1987, %v1989
        %v1991 = vsel %vm1983, %v1970, %v1973
        %v1992 = vsel %vm1986, %v1979, 920167782
        %v1993 = vsel %vm1985, %v1976, %v1992
        %v1994 = vsel %vm1984, %v1991, %v1993
        %v1995 = vsel %vm1983, %v1973, %v1976
        %v1996 = vsel %vm1986, %v1982, 1326507024
        %v1997 = vsel %vm1985, %v1979, %v1996
        %v1998 = vsel %vm1984, %v1995, %v1997
        %v1999 = vshll.u32 %v1959, 8
        %v2000 = vmul.u32.u64.compose %v1999, %v1998
        %v2001 = vextract.low.u32 %v2000
        %v2002 = vextract.high.u32 %v2000
        %v2003 = vmul.u32.u64.compose %v1999, %v1994
        %v2004 = vextract.low.u32 %v2003
        %v2005 = vextract.high.u32 %v2003
        %v2006 = vmul.u32 %v1999, %v1990
        %v2007 = vadd.s32 %v2002, %v2004
        %vm2008 = vc.u32 %v2002, %v2004
        %v2009 = vadd.s32 %v2005, 1
        %v2010 = vsel %vm2008, %v2009, %v2005
        %v2011 = vadd.s32 %v2006, %v2010
        %v2012 = vadd.s32 %v2011, 536870912
        %v2013 = vshrl.u32 %v2012, 30
        %v2014 = vshll.u32 %v2013, 30
        %v2015 = vsub.s32 %v2011, %v2014
        %vm2016 = vcmp.lt.s32.totalorder %v2015, 0
        %v2017 = vsub.s32 0, %v2015
        %v2018 = vsel %vm2016, %v2017, %v2015
        %v2019 = vclz %v2018
        %v2020 = vsub.s32 %v2019, 2
        %vm2021 = vcmp.gt.s32.totalorder 0, %v2020
        %v2022 = vsel %vm2021, 0, %v2020
        %v2023 = vsub.s32 32, %v2022
        %v2024 = vshll.u32 %v2015, %v2022
        %v2025 = vshrl.u32 %v2007, %v2023
        %v2026 = vor.u32 %v2024, %v2025
        %v2027 = vsub.s32 4294967266, %v2022
        %v2028 = vadd.s32 %v2027, 127
        %v2029 = vshll.u32 %v2028, 23
        %v2030 = vor.u32 4788187, %v2029
        %v2031 = vand.u32 2147483647, %v2030
        %v2033 = vcvt.s32.f32 %v2026
        %v2034 = vmul.f32 %v2033, %v2031
        %v2035 = vxor.u32 %v2034, 2147483648
        %v2036 = vsel %vm1953, %v2035, %v2034
        %v2037 = vsub.s32 4, %v2013
        %v2038 = vsel %vm1953, %v2037, %v2013
        %v2039 = vsel %vm1952, %v813, %v2036
        %v2040 = vsel %vm1952, 0, %v2038
        %v2041 = vcosq.f32.pop %v2039
        %v2042 = vsinq.f32.pop %v2039
        %vm2043 = vweird.f32 %v813
        %v2044 = vand.u32 %v2040, 3
        %vm2045 = vcmp.lt.s32.totalorder %v2044, 2
        %vm2046 = vcmp.eq.s32.totalorder %v2044, 0
        %v2047 = vxor.u32 %v2042, 2147483648
        %v2048 = vsel %vm2046, %v2041, %v2047
        %vm2049 = vcmp.eq.s32.totalorder %v2044, 2
        %v2050 = vxor.u32 %v2041, 2147483648
        %v2051 = vsel %vm2049, %v2050, %v2042
        %v2052 = vsel %vm2045, %v2048, %v2051
        %v2053 = vsel %vm2043, nan, %v2052
        %v2054 = vand.u32 2147483647, %v814
        %vm2055 = vcmp.le.f32.partialorder %v2054, 0.7853982
        %vm2056 = vcmp.lt.s32.totalorder %v814, 0
        %v2057 = vand.u32 %v814, 2139095040
        %v2058 = vshrl.u32 %v2057, 23
        %v2059 = vsub.s32 %v2058, 127
        %v2060 = vand.u32 2147483647, %v814
        %v2061 = vand.u32 %v2060, 8388607
        %v2062 = vor.u32 %v2061, 8388608
        %v2063 = vsub.s32 0, %v2062
        %v2064 = vadd.s32 %v2059, 1
        %vm2065 = vcmp.gt.s32.totalorder %v2064, 0
        %v2066 = vsel %vm2065, %v2064, 0
        %v2067 = vshrl.u32 %v2066, 5
        %v2068 = vand.u32 %v2066, 31
        %v2069 = vsub.s32 32, %v2068
        %v2070 = vshrl.u32 683565275, %v2069
        %v2071 = vshll.u32 683565275, %v2068
        %v2072 = vshrl.u32 2475754826, %v2069
        %v2073 = vor.u32 %v2071, %v2072
        %v2074 = vshll.u32 2475754826, %v2068
        %v2075 = vshrl.u32 2131351028, %v2069
        %v2076 = vor.u32 %v2074, %v2075
        %v2077 = vshll.u32 2131351028, %v2068
        %v2078 = vshrl.u32 2102212464, %v2069
        %v2079 = vor.u32 %v2077, %v2078
        %v2080 = vshll.u32 2102212464, %v2068
        %v2081 = vshrl.u32 920167782, %v2069
        %v2082 = vor.u32 %v2080, %v2081
        %v2083 = vshll.u32 920167782, %v2068
        %v2084 = vshrl.u32 1326507024, %v2069
        %v2085 = vor.u32 %v2083, %v2084
        %vm2086 = vcmp.lt.s32.totalorder %v2067, 1
        %vm2087 = vcmp.lt.s32.totalorder %v2067, 2
        %vm2088 = vcmp.lt.s32.totalorder %v2067, 3
        %vm2089 = vcmp.lt.s32.totalorder %v2067, 4
        %v2090 = vsel %vm2086, %v2070, %v2073
        %v2091 = vsel %vm2089, %v2079, 2102212464
        %v2092 = vsel %vm2088, %v2076, %v2091
        %v2093 = vsel %vm2087, %v2090, %v2092
        %v2094 = vsel %vm2086, %v2073, %v2076
        %v2095 = vsel %vm2089, %v2082, 920167782
        %v2096 = vsel %vm2088, %v2079, %v2095
        %v2097 = vsel %vm2087, %v2094, %v2096
        %v2098 = vsel %vm2086, %v2076, %v2079
        %v2099 = vsel %vm2089, %v2085, 1326507024
        %v2100 = vsel %vm2088, %v2082, %v2099
        %v2101 = vsel %vm2087, %v2098, %v2100
        %v2102 = vshll.u32 %v2062, 8
        %v2103 = vmul.u32.u64.compose %v2102, %v2101
        %v2104 = vextract.low.u32 %v2103
        %v2105 = vextract.high.u32 %v2103
        %v2106 = vmul.u32.u64.compose %v2102, %v2097
        %v2107 = vextract.low.u32 %v2106
        %v2108 = vextract.high.u32 %v2106
        %v2109 = vmul.u32 %v2102, %v2093
        %v2110 = vadd.s32 %v2105, %v2107
        %vm2111 = vc.u32 %v2105, %v2107
        %v2112 = vadd.s32 %v2108, 1
        %v2113 = vsel %vm2111, %v2112, %v2108
        %v2114 = vadd.s32 %v2109, %v2113
        %v2115 = vadd.s32 %v2114, 536870912
        %v2116 = vshrl.u32 %v2115, 30
        %v2117 = vshll.u32 %v2116, 30
        %v2118 = vsub.s32 %v2114, %v2117
        %vm2119 = vcmp.lt.s32.totalorder %v2118, 0
        %v2120 = vsub.s32 0, %v2118
        %v2121 = vsel %vm2119, %v2120, %v2118
        %v2122 = vclz %v2121
        %v2123 = vsub.s32 %v2122, 2
        %vm2124 = vcmp.gt.s32.totalorder 0, %v2123
        %v2125 = vsel %vm2124, 0, %v2123
        %v2126 = vsub.s32 32, %v2125
        %v2127 = vshll.u32 %v2118, %v2125
        %v2128 = vshrl.u32 %v2110, %v2126
        %v2129 = vor.u32 %v2127, %v2128
        %v2130 = vsub.s32 4294967266, %v2125
        %v2131 = vadd.s32 %v2130, 127
        %v2132 = vshll.u32 %v2131, 23
        %v2133 = vor.u32 4788187, %v2132
        %v2134 = vand.u32 2147483647, %v2133
        %v2136 = vcvt.s32.f32 %v2129
        %v2137 = vmul.f32 %v2136, %v2134
        %v2138 = vxor.u32 %v2137, 2147483648
        %v2139 = vsel %vm2056, %v2138, %v2137
        %v2140 = vsub.s32 4, %v2116
        %v2141 = vsel %vm2056, %v2140, %v2116
        %v2142 = vsel %vm2055, %v814, %v2139
        %v2143 = vsel %vm2055, 0, %v2141
        %v2144 = vcosq.f32.pop %v2142
        %v2145 = vsinq.f32.pop %v2142
        %vm2146 = vweird.f32 %v814
        %v2147 = vand.u32 %v2143, 3
        %vm2148 = vcmp.lt.s32.totalorder %v2147, 2
        %vm2149 = vcmp.eq.s32.totalorder %v2147, 0
        %v2150 = vxor.u32 %v2145, 2147483648
        %v2151 = vsel %vm2149, %v2144, %v2150
        %vm2152 = vcmp.eq.s32.totalorder %v2147, 2
        %v2153 = vxor.u32 %v2144, 2147483648
        %v2154 = vsel %vm2152, %v2153, %v2145
        %v2155 = vsel %vm2148, %v2151, %v2154
        %v2156 = vsel %vm2146, nan, %v2155
        %v2157 = vand.u32 2147483647, %v815
        %vm2158 = vcmp.le.f32.partialorder %v2157, 0.7853982
        %vm2159 = vcmp.lt.s32.totalorder %v815, 0
        %v2160 = vand.u32 %v815, 2139095040
        %v2161 = vshrl.u32 %v2160, 23
        %v2162 = vsub.s32 %v2161, 127
        %v2163 = vand.u32 2147483647, %v815
        %v2164 = vand.u32 %v2163, 8388607
        %v2165 = vor.u32 %v2164, 8388608
        %v2166 = vsub.s32 0, %v2165
        %v2167 = vadd.s32 %v2162, 1
        %vm2168 = vcmp.gt.s32.totalorder %v2167, 0
        %v2169 = vsel %vm2168, %v2167, 0
        %v2170 = vshrl.u32 %v2169, 5
        %v2171 = vand.u32 %v2169, 31
        %v2172 = vsub.s32 32, %v2171
        %v2173 = vshrl.u32 683565275, %v2172
        %v2174 = vshll.u32 683565275, %v2171
        %v2175 = vshrl.u32 2475754826, %v2172
        %v2176 = vor.u32 %v2174, %v2175
        %v2177 = vshll.u32 2475754826, %v2171
        %v2178 = vshrl.u32 2131351028, %v2172
        %v2179 = vor.u32 %v2177, %v2178
        %v2180 = vshll.u32 2131351028, %v2171
        %v2181 = vshrl.u32 2102212464, %v2172
        %v2182 = vor.u32 %v2180, %v2181
        %v2183 = vshll.u32 2102212464, %v2171
        %v2184 = vshrl.u32 920167782, %v2172
        %v2185 = vor.u32 %v2183, %v2184
        %v2186 = vshll.u32 920167782, %v2171
        %v2187 = vshrl.u32 1326507024, %v2172
        %v2188 = vor.u32 %v2186, %v2187
        %vm2189 = vcmp.lt.s32.totalorder %v2170, 1
        %vm2190 = vcmp.lt.s32.totalorder %v2170, 2
        %vm2191 = vcmp.lt.s32.totalorder %v2170, 3
        %vm2192 = vcmp.lt.s32.totalorder %v2170, 4
        %v2193 = vsel %vm2189, %v2173, %v2176
        %v2194 = vsel %vm2192, %v2182, 2102212464
        %v2195 = vsel %vm2191, %v2179, %v2194
        %v2196 = vsel %vm2190, %v2193, %v2195
        %v2197 = vsel %vm2189, %v2176, %v2179
        %v2198 = vsel %vm2192, %v2185, 920167782
        %v2199 = vsel %vm2191, %v2182, %v2198
        %v2200 = vsel %vm2190, %v2197, %v2199
        %v2201 = vsel %vm2189, %v2179, %v2182
        %v2202 = vsel %vm2192, %v2188, 1326507024
        %v2203 = vsel %vm2191, %v2185, %v2202
        %v2204 = vsel %vm2190, %v2201, %v2203
        %v2205 = vshll.u32 %v2165, 8
        %v2206 = vmul.u32.u64.compose %v2205, %v2204
        %v2207 = vextract.low.u32 %v2206
        %v2208 = vextract.high.u32 %v2206
        %v2209 = vmul.u32.u64.compose %v2205, %v2200
        %v2210 = vextract.low.u32 %v2209
        %v2211 = vextract.high.u32 %v2209
        %v2212 = vmul.u32 %v2205, %v2196
        %v2213 = vadd.s32 %v2208, %v2210
        %vm2214 = vc.u32 %v2208, %v2210
        %v2215 = vadd.s32 %v2211, 1
        %v2216 = vsel %vm2214, %v2215, %v2211
        %v2217 = vadd.s32 %v2212, %v2216
        %v2218 = vadd.s32 %v2217, 536870912
        %v2219 = vshrl.u32 %v2218, 30
        %v2220 = vshll.u32 %v2219, 30
        %v2221 = vsub.s32 %v2217, %v2220
        %vm2222 = vcmp.lt.s32.totalorder %v2221, 0
        %v2223 = vsub.s32 0, %v2221
        %v2224 = vsel %vm2222, %v2223, %v2221
        %v2225 = vclz %v2224
        %v2226 = vsub.s32 %v2225, 2
        %vm2227 = vcmp.gt.s32.totalorder 0, %v2226
        %v2228 = vsel %vm2227, 0, %v2226
        %v2229 = vsub.s32 32, %v2228
        %v2230 = vshll.u32 %v2221, %v2228
        %v2231 = vshrl.u32 %v2213, %v2229
        %v2232 = vor.u32 %v2230, %v2231
        %v2233 = vsub.s32 4294967266, %v2228
        %v2234 = vadd.s32 %v2233, 127
        %v2235 = vshll.u32 %v2234, 23
        %v2236 = vor.u32 4788187, %v2235
        %v2237 = vand.u32 2147483647, %v2236
        %v2239 = vcvt.s32.f32 %v2232
        %v2240 = vmul.f32 %v2239, %v2237
        %v2241 = vxor.u32 %v2240, 2147483648
        %v2242 = vsel %vm2159, %v2241, %v2240
        %v2243 = vsub.s32 4, %v2219
        %v2244 = vsel %vm2159, %v2243, %v2219
        %v2245 = vsel %vm2158, %v815, %v2242
        %v2246 = vsel %vm2158, 0, %v2244
        %v2247 = vcosq.f32.pop %v2245
        %v2248 = vsinq.f32.pop %v2245
        %vm2249 = vweird.f32 %v815
        %v2250 = vand.u32 %v2246, 3
        %vm2251 = vcmp.lt.s32.totalorder %v2250, 2
        %vm2252 = vcmp.eq.s32.totalorder %v2250, 0
        %v2253 = vxor.u32 %v2248, 2147483648
        %v2254 = vsel %vm2252, %v2247, %v2253
        %vm2255 = vcmp.eq.s32.totalorder %v2250, 2
        %v2256 = vxor.u32 %v2247, 2147483648
        %v2257 = vsel %vm2255, %v2256, %v2248
        %v2258 = vsel %vm2251, %v2254, %v2257
        %v2259 = vsel %vm2249, nan, %v2258
        %v2260 = vand.u32 2147483647, %v816
        %vm2261 = vcmp.le.f32.partialorder %v2260, 0.7853982
        %vm2262 = vcmp.lt.s32.totalorder %v816, 0
        %v2263 = vand.u32 %v816, 2139095040
        %v2264 = vshrl.u32 %v2263, 23
        %v2265 = vsub.s32 %v2264, 127
        %v2266 = vand.u32 2147483647, %v816
        %v2267 = vand.u32 %v2266, 8388607
        %v2268 = vor.u32 %v2267, 8388608
        %v2269 = vsub.s32 0, %v2268
        %v2270 = vadd.s32 %v2265, 1
        %vm2271 = vcmp.gt.s32.totalorder %v2270, 0
        %v2272 = vsel %vm2271, %v2270, 0
        %v2273 = vshrl.u32 %v2272, 5
        %v2274 = vand.u32 %v2272, 31
        %v2275 = vsub.s32 32, %v2274
        %v2276 = vshrl.u32 683565275, %v2275
        %v2277 = vshll.u32 683565275, %v2274
        %v2278 = vshrl.u32 2475754826, %v2275
        %v2279 = vor.u32 %v2277, %v2278
        %v2280 = vshll.u32 2475754826, %v2274
        %v2281 = vshrl.u32 2131351028, %v2275
        %v2282 = vor.u32 %v2280, %v2281
        %v2283 = vshll.u32 2131351028, %v2274
        %v2284 = vshrl.u32 2102212464, %v2275
        %v2285 = vor.u32 %v2283, %v2284
        %v2286 = vshll.u32 2102212464, %v2274
        %v2287 = vshrl.u32 920167782, %v2275
        %v2288 = vor.u32 %v2286, %v2287
        %v2289 = vshll.u32 920167782, %v2274
        %v2290 = vshrl.u32 1326507024, %v2275
        %v2291 = vor.u32 %v2289, %v2290
        %vm2292 = vcmp.lt.s32.totalorder %v2273, 1
        %vm2293 = vcmp.lt.s32.totalorder %v2273, 2
        %vm2294 = vcmp.lt.s32.totalorder %v2273, 3
        %vm2295 = vcmp.lt.s32.totalorder %v2273, 4
        %v2296 = vsel %vm2292, %v2276, %v2279
        %v2297 = vsel %vm2295, %v2285, 2102212464
        %v2298 = vsel %vm2294, %v2282, %v2297
        %v2299 = vsel %vm2293, %v2296, %v2298
        %v2300 = vsel %vm2292, %v2279, %v2282
        %v2301 = vsel %vm2295, %v2288, 920167782
        %v2302 = vsel %vm2294, %v2285, %v2301
        %v2303 = vsel %vm2293, %v2300, %v2302
        %v2304 = vsel %vm2292, %v2282, %v2285
        %v2305 = vsel %vm2295, %v2291, 1326507024
        %v2306 = vsel %vm2294, %v2288, %v2305
        %v2307 = vsel %vm2293, %v2304, %v2306
        %v2308 = vshll.u32 %v2268, 8
        %v2309 = vmul.u32.u64.compose %v2308, %v2307
        %v2310 = vextract.low.u32 %v2309
        %v2311 = vextract.high.u32 %v2309
        %v2312 = vmul.u32.u64.compose %v2308, %v2303
        %v2313 = vextract.low.u32 %v2312
        %v2314 = vextract.high.u32 %v2312
        %v2315 = vmul.u32 %v2308, %v2299
        %v2316 = vadd.s32 %v2311, %v2313
        %vm2317 = vc.u32 %v2311, %v2313
        %v2318 = vadd.s32 %v2314, 1
        %v2319 = vsel %vm2317, %v2318, %v2314
        %v2320 = vadd.s32 %v2315, %v2319
        %v2321 = vadd.s32 %v2320, 536870912
        %v2322 = vshrl.u32 %v2321, 30
        %v2323 = vshll.u32 %v2322, 30
        %v2324 = vsub.s32 %v2320, %v2323
        %vm2325 = vcmp.lt.s32.totalorder %v2324, 0
        %v2326 = vsub.s32 0, %v2324
        %v2327 = vsel %vm2325, %v2326, %v2324
        %v2328 = vclz %v2327
        %v2329 = vsub.s32 %v2328, 2
        %vm2330 = vcmp.gt.s32.totalorder 0, %v2329
        %v2331 = vsel %vm2330, 0, %v2329
        %v2332 = vsub.s32 32, %v2331
        %v2333 = vshll.u32 %v2324, %v2331
        %v2334 = vshrl.u32 %v2316, %v2332
        %v2335 = vor.u32 %v2333, %v2334
        %v2336 = vsub.s32 4294967266, %v2331
        %v2337 = vadd.s32 %v2336, 127
        %v2338 = vshll.u32 %v2337, 23
        %v2339 = vor.u32 4788187, %v2338
        %v2340 = vand.u32 2147483647, %v2339
        %v2342 = vcvt.s32.f32 %v2335
        %v2343 = vmul.f32 %v2342, %v2340
        %v2344 = vxor.u32 %v2343, 2147483648
        %v2345 = vsel %vm2262, %v2344, %v2343
        %v2346 = vsub.s32 4, %v2322
        %v2347 = vsel %vm2262, %v2346, %v2322
        %v2348 = vsel %vm2261, %v816, %v2345
        %v2349 = vsel %vm2261, 0, %v2347
        %v2350 = vcosq.f32.pop %v2348
        %v2351 = vsinq.f32.pop %v2348
        %vm2352 = vweird.f32 %v816
        %v2353 = vand.u32 %v2349, 3
        %vm2354 = vcmp.lt.s32.totalorder %v2353, 2
        %vm2355 = vcmp.eq.s32.totalorder %v2353, 0
        %v2356 = vxor.u32 %v2351, 2147483648
        %v2357 = vsel %vm2355, %v2350, %v2356
        %vm2358 = vcmp.eq.s32.totalorder %v2353, 2
        %v2359 = vxor.u32 %v2350, 2147483648
        %v2360 = vsel %vm2358, %v2359, %v2351
        %v2361 = vsel %vm2354, %v2357, %v2360
        %v2362 = vsel %vm2352, nan, %v2361
        %v2363 = vand.u32 2147483647, %v817
        %vm2364 = vcmp.le.f32.partialorder %v2363, 0.7853982
        %vm2365 = vcmp.lt.s32.totalorder %v817, 0
        %v2366 = vand.u32 %v817, 2139095040
        %v2367 = vshrl.u32 %v2366, 23
        %v2368 = vsub.s32 %v2367, 127
        %v2369 = vand.u32 2147483647, %v817
        %v2370 = vand.u32 %v2369, 8388607
        %v2371 = vor.u32 %v2370, 8388608
        %v2372 = vsub.s32 0, %v2371
        %v2373 = vadd.s32 %v2368, 1
        %vm2374 = vcmp.gt.s32.totalorder %v2373, 0
        %v2375 = vsel %vm2374, %v2373, 0
        %v2376 = vshrl.u32 %v2375, 5
        %v2377 = vand.u32 %v2375, 31
        %v2378 = vsub.s32 32, %v2377
        %v2379 = vshrl.u32 683565275, %v2378
        %v2380 = vshll.u32 683565275, %v2377
        %v2381 = vshrl.u32 2475754826, %v2378
        %v2382 = vor.u32 %v2380, %v2381
        %v2383 = vshll.u32 2475754826, %v2377
        %v2384 = vshrl.u32 2131351028, %v2378
        %v2385 = vor.u32 %v2383, %v2384
        %v2386 = vshll.u32 2131351028, %v2377
        %v2387 = vshrl.u32 2102212464, %v2378
        %v2388 = vor.u32 %v2386, %v2387
        %v2389 = vshll.u32 2102212464, %v2377
        %v2390 = vshrl.u32 920167782, %v2378
        %v2391 = vor.u32 %v2389, %v2390
        %v2392 = vshll.u32 920167782, %v2377
        %v2393 = vshrl.u32 1326507024, %v2378
        %v2394 = vor.u32 %v2392, %v2393
        %vm2395 = vcmp.lt.s32.totalorder %v2376, 1
        %vm2396 = vcmp.lt.s32.totalorder %v2376, 2
        %vm2397 = vcmp.lt.s32.totalorder %v2376, 3
        %vm2398 = vcmp.lt.s32.totalorder %v2376, 4
        %v2399 = vsel %vm2395, %v2379, %v2382
        %v2400 = vsel %vm2398, %v2388, 2102212464
        %v2401 = vsel %vm2397, %v2385, %v2400
        %v2402 = vsel %vm2396, %v2399, %v2401
        %v2403 = vsel %vm2395, %v2382, %v2385
        %v2404 = vsel %vm2398, %v2391, 920167782
        %v2405 = vsel %vm2397, %v2388, %v2404
        %v2406 = vsel %vm2396, %v2403, %v2405
        %v2407 = vsel %vm2395, %v2385, %v2388
        %v2408 = vsel %vm2398, %v2394, 1326507024
        %v2409 = vsel %vm2397, %v2391, %v2408
        %v2410 = vsel %vm2396, %v2407, %v2409
        %v2411 = vshll.u32 %v2371, 8
        %v2412 = vmul.u32.u64.compose %v2411, %v2410
        %v2413 = vextract.low.u32 %v2412
        %v2414 = vextract.high.u32 %v2412
        %v2415 = vmul.u32.u64.compose %v2411, %v2406
        %v2416 = vextract.low.u32 %v2415
        %v2417 = vextract.high.u32 %v2415
        %v2418 = vmul.u32 %v2411, %v2402
        %v2419 = vadd.s32 %v2414, %v2416
        %vm2420 = vc.u32 %v2414, %v2416
        %v2421 = vadd.s32 %v2417, 1
        %v2422 = vsel %vm2420, %v2421, %v2417
        %v2423 = vadd.s32 %v2418, %v2422
        %v2424 = vadd.s32 %v2423, 536870912
        %v2425 = vshrl.u32 %v2424, 30
        %v2426 = vshll.u32 %v2425, 30
        %v2427 = vsub.s32 %v2423, %v2426
        %vm2428 = vcmp.lt.s32.totalorder %v2427, 0
        %v2429 = vsub.s32 0, %v2427
        %v2430 = vsel %vm2428, %v2429, %v2427
        %v2431 = vclz %v2430
        %v2432 = vsub.s32 %v2431, 2
        %vm2433 = vcmp.gt.s32.totalorder 0, %v2432
        %v2434 = vsel %vm2433, 0, %v2432
        %v2435 = vsub.s32 32, %v2434
        %v2436 = vshll.u32 %v2427, %v2434
        %v2437 = vshrl.u32 %v2419, %v2435
        %v2438 = vor.u32 %v2436, %v2437
        %v2439 = vsub.s32 4294967266, %v2434
        %v2440 = vadd.s32 %v2439, 127
        %v2441 = vshll.u32 %v2440, 23
        %v2442 = vor.u32 4788187, %v2441
        %v2443 = vand.u32 2147483647, %v2442
        %v2445 = vcvt.s32.f32 %v2438
        %v2446 = vmul.f32 %v2445, %v2443
        %v2447 = vxor.u32 %v2446, 2147483648
        %v2448 = vsel %vm2365, %v2447, %v2446
        %v2449 = vsub.s32 4, %v2425
        %v2450 = vsel %vm2365, %v2449, %v2425
        %v2451 = vsel %vm2364, %v817, %v2448
        %v2452 = vsel %vm2364, 0, %v2450
        %v2453 = vcosq.f32.pop %v2451
        %v2454 = vsinq.f32.pop %v2451
        %vm2455 = vweird.f32 %v817
        %v2456 = vand.u32 %v2452, 3
        %vm2457 = vcmp.lt.s32.totalorder %v2456, 2
        %vm2458 = vcmp.eq.s32.totalorder %v2456, 0
        %v2459 = vxor.u32 %v2454, 2147483648
        %v2460 = vsel %vm2458, %v2453, %v2459
        %vm2461 = vcmp.eq.s32.totalorder %v2456, 2
        %v2462 = vxor.u32 %v2453, 2147483648
        %v2463 = vsel %vm2461, %v2462, %v2454
        %v2464 = vsel %vm2457, %v2460, %v2463
        %v2465 = vsel %vm2455, nan, %v2464
        %v2466 = vmul.f32 %v920, %v920
        %v2467 = vmul.f32 %v1023, %v1023
        %v2468 = vmul.f32 %v1126, %v1126
        %v2469 = vmul.f32 %v1229, %v1229
        %v2470 = vmul.f32 %v1332, %v1332
        %v2471 = vmul.f32 %v1435, %v1435
        %v2472 = vmul.f32 %v1538, %v1538
        %v2473 = vmul.f32 %v1641, %v1641
        %v2474 = vmul.f32 %v1744, %v1744
        %v2475 = vmul.f32 %v1847, %v1847
        %v2476 = vmul.f32 %v1950, %v1950
        %v2477 = vmul.f32 %v2053, %v2053
        %v2478 = vmul.f32 %v2156, %v2156
        %v2479 = vmul.f32 %v2259, %v2259
        %v2480 = vmul.f32 %v2362, %v2362
        %v2481 = vmul.f32 %v2465, %v2465
        %v2482 = vmul.f32 %v2466, %v2466
        %v2483 = vmul.f32 %v2467, %v2467
        %v2484 = vmul.f32 %v2468, %v2468
        %v2485 = vmul.f32 %v2469, %v2469
        %v2486 = vmul.f32 %v2470, %v2470
        %v2487 = vmul.f32 %v2471, %v2471
        %v2488 = vmul.f32 %v2472, %v2472
        %v2489 = vmul.f32 %v2473, %v2473
        %v2490 = vmul.f32 %v2474, %v2474
        %v2491 = vmul.f32 %v2475, %v2475
        %v2492 = vmul.f32 %v2476, %v2476
        %v2493 = vmul.f32 %v2477, %v2477
        %v2494 = vmul.f32 %v2478, %v2478
        %v2495 = vmul.f32 %v2479, %v2479
        %v2496 = vmul.f32 %v2480, %v2480
        %v2497 = vmul.f32 %v2481, %v2481
        %v2498 = vsel %vm690, %v2482, 0.0
        %v2499 = vsel %vm691, %v2483, 0.0
        %v2500 = vsel %vm692, %v2484, 0.0
        %v2501 = vsel %vm693, %v2485, 0.0
        %v2502 = vsel %vm694, %v2486, 0.0
        %v2503 = vsel %vm695, %v2487, 0.0
        %v2504 = vsel %vm696, %v2488, 0.0
        %v2505 = vsel %vm697, %v2489, 0.0
        %v2506 = vsel %vm698, %v2490, 0.0
        %v2507 = vsel %vm699, %v2491, 0.0
        %v2508 = vsel %vm700, %v2492, 0.0
        %v2509 = vsel %vm701, %v2493, 0.0
        %v2510 = vsel %vm702, %v2494, 0.0
        %v2511 = vsel %vm703, %v2495, 0.0
        %v2512 = vsel %vm704, %v2496, 0.0
        %v2513 = vsel %vm705, %v2497, 0.0
        %v2514 = vmul.f32 %v2498, %v786
        %v2515 = vmul.f32 %v2499, %v787
        %v2516 = vmul.f32 %v2500, %v788
        %v2517 = vmul.f32 %v2501, %v789
        %v2518 = vmul.f32 %v2502, %v790
        %v2519 = vmul.f32 %v2503, %v791
        %v2520 = vmul.f32 %v2504, %v792
        %v2521 = vmul.f32 %v2505, %v793
        %v2522 = vmul.f32 %v2506, %v794
        %v2523 = vmul.f32 %v2507, %v795
        %v2524 = vmul.f32 %v2508, %v796
        %v2525 = vmul.f32 %v2509, %v797
        %v2526 = vmul.f32 %v2510, %v798
        %v2527 = vmul.f32 %v2511, %v799
        %v2528 = vmul.f32 %v2512, %v800
        %v2529 = vmul.f32 %v2513, %v801
        %v2530 = vmul.f32 %v2498, %v770
        %v2531 = vmul.f32 %v2499, %v771
        %v2532 = vmul.f32 %v2500, %v772
        %v2533 = vmul.f32 %v2501, %v773
        %v2534 = vmul.f32 %v2502, %v774
        %v2535 = vmul.f32 %v2503, %v775
        %v2536 = vmul.f32 %v2504, %v776
        %v2537 = vmul.f32 %v2505, %v777
        %v2538 = vmul.f32 %v2506, %v778
        %v2539 = vmul.f32 %v2507, %v779
        %v2540 = vmul.f32 %v2508, %v780
        %v2541 = vmul.f32 %v2509, %v781
        %v2542 = vmul.f32 %v2510, %v782
        %v2543 = vmul.f32 %v2511, %v783
        %v2544 = vmul.f32 %v2512, %v784
        %v2545 = vmul.f32 %v2513, %v785
        %v2546 = vmul.f32 %v2498, %v754
        %v2547 = vmul.f32 %v2499, %v755
        %v2548 = vmul.f32 %v2500, %v756
        %v2549 = vmul.f32 %v2501, %v757
        %v2550 = vmul.f32 %v2502, %v758
        %v2551 = vmul.f32 %v2503, %v759
        %v2552 = vmul.f32 %v2504, %v760
        %v2553 = vmul.f32 %v2505, %v761
        %v2554 = vmul.f32 %v2506, %v762
        %v2555 = vmul.f32 %v2507, %v763
        %v2556 = vmul.f32 %v2508, %v764
        %v2557 = vmul.f32 %v2509, %v765
        %v2558 = vmul.f32 %v2510, %v766
        %v2559 = vmul.f32 %v2511, %v767
        %v2560 = vmul.f32 %v2512, %v768
        %v2561 = vmul.f32 %v2513, %v769
        %v2562 = vld [vmem:[%s271] sm:$0xf]
        %2563 = vmatprep.subr.mxu0 %v2514
        %2564 = vmatpush1.msra.mxu0 %v2498
        %2565 = vmatprep.subr.mxu0 %v2515
        %2566 = vmatpush1.msra.mxu0 %v2499
        %2567 = vmatprep.subr.mxu0 %v2516
        %2568 = vmatpush1.msra.mxu0 %v2500
        %2569 = vmatprep.subr.mxu0 %v2517
        %2570 = vmatpush1.msra.mxu0 %v2501
        %2571 = vmatprep.subr.mxu0 %v2518
        %2572 = vmatpush1.msra.mxu0 %v2502
        %2573 = vmatprep.subr.mxu0 %v2519
        %2574 = vmatpush1.msra.mxu0 %v2503
        %2575 = vmatprep.subr.mxu0 %v2520
        %2576 = vmatpush1.msra.mxu0 %v2504
        %2577 = vmatprep.subr.mxu0 %v2521
        %2578 = vmatpush1.msra.mxu0 %v2505
        %2579 = vmatprep.subr.mxu0 %v2522
        %2580 = vmatpush1.msra.mxu0 %v2506
        %2581 = vmatprep.subr.mxu0 %v2523
        %2582 = vmatpush1.msra.mxu0 %v2507
        %2583 = vmatprep.subr.mxu0 %v2524
        %2584 = vmatpush1.msra.mxu0 %v2508
        %2585 = vmatprep.subr.mxu0 %v2525
        %2586 = vmatpush1.msra.mxu0 %v2509
        %2587 = vmatprep.subr.mxu0 %v2526
        %2588 = vmatpush1.msra.mxu0 %v2510
        %2589 = vmatprep.subr.mxu0 %v2527
        %2590 = vmatpush1.msra.mxu0 %v2511
        %2591 = vmatprep.subr.mxu0 %v2528
        %2592 = vmatpush1.msra.mxu0 %v2512
        %2593 = vmatprep.subr.mxu0 %v2529
        %2594 = vmatpush1.msra.mxu0 %v2513
        %2595 = vmatprep.subr.mxu0 0.0
        %2596 = vmatpush1.msra.mxu0 0.0
        %2597 = vmatprep.subr.mxu0 0.0
        %2598 = vmatpush1.msra.mxu0 0.0
        %2599 = vmatprep.subr.mxu0 0.0
        %2600 = vmatpush1.msra.mxu0 0.0
        %2601 = vmatprep.subr.mxu0 0.0
        %2602 = vmatpush1.msra.mxu0 0.0
        %2603 = vmatprep.subr.mxu0 0.0
        %2604 = vmatpush1.msra.mxu0 0.0
        %2605 = vmatprep.subr.mxu0 0.0
        %2606 = vmatpush1.msra.mxu0 0.0
        %2607 = vmatprep.subr.mxu0 0.0
        %2608 = vmatpush1.msra.mxu0 0.0
        %2609 = vmatprep.subr.mxu0 0.0
        %2610 = vmatpush1.msra.mxu0 0.0
        %2611 = vmatprep.subr.mxu0 0.0
        %2612 = vmatpush1.msra.mxu0 0.0
        %2613 = vmatprep.subr.mxu0 0.0
        %2614 = vmatpush1.msra.mxu0 0.0
        %2615 = vmatprep.subr.mxu0 0.0
        %2616 = vmatpush1.msra.mxu0 0.0
        %2617 = vmatprep.subr.mxu0 0.0
        %2618 = vmatpush1.msra.mxu0 0.0
        %2619 = vmatprep.subr.mxu0 0.0
        %2620 = vmatpush1.msra.mxu0 0.0
        %2621 = vmatprep.subr.mxu0 0.0
        %2622 = vmatpush1.msra.mxu0 0.0
        %2623 = vmatprep.subr.mxu0 0.0
        %2624 = vmatpush1.msra.mxu0 0.0
        %2625 = vmatprep.subr.mxu0 0.0
        %2626 = vmatpush1.msra.mxu0 0.0
        %2627 = vmatprep.mubr.f32.mxu0 0.0
        %2628 = vmatmul.mubr.f32.gmra.mrb[0].mxu0 %v2562
        %v2629 = vpop.f32.mrb[0].mxu0
        %v2630 = vadd.f32 0.0, %v2629
        %v2631 = vpop.f32.mrb[0].mxu0
        %v2632 = vadd.f32 0.0, %v2631
        %2633 = vdwg.mxu0
        %2634 = vmatprep.subr.mxu0 %v2546
        %2635 = vmatpush1.msra.mxu0 %v2530
        %2636 = vmatprep.subr.mxu0 %v2547
        %2637 = vmatpush1.msra.mxu0 %v2531
        %2638 = vmatprep.subr.mxu0 %v2548
        %2639 = vmatpush1.msra.mxu0 %v2532
        %2640 = vmatprep.subr.mxu0 %v2549
        %2641 = vmatpush1.msra.mxu0 %v2533
        %2642 = vmatprep.subr.mxu0 %v2550
        %2643 = vmatpush1.msra.mxu0 %v2534
        %2644 = vmatprep.subr.mxu0 %v2551
        %2645 = vmatpush1.msra.mxu0 %v2535
        %2646 = vmatprep.subr.mxu0 %v2552
        %2647 = vmatpush1.msra.mxu0 %v2536
        %2648 = vmatprep.subr.mxu0 %v2553
        %2649 = vmatpush1.msra.mxu0 %v2537
        %2650 = vmatprep.subr.mxu0 %v2554
        %2651 = vmatpush1.msra.mxu0 %v2538
        %2652 = vmatprep.subr.mxu0 %v2555
        %2653 = vmatpush1.msra.mxu0 %v2539
        %2654 = vmatprep.subr.mxu0 %v2556
        %2655 = vmatpush1.msra.mxu0 %v2540
        %2656 = vmatprep.subr.mxu0 %v2557
        %2657 = vmatpush1.msra.mxu0 %v2541
        %2658 = vmatprep.subr.mxu0 %v2558
        %2659 = vmatpush1.msra.mxu0 %v2542
        %2660 = vmatprep.subr.mxu0 %v2559
        %2661 = vmatpush1.msra.mxu0 %v2543
        %2662 = vmatprep.subr.mxu0 %v2560
        %2663 = vmatpush1.msra.mxu0 %v2544
        %2664 = vmatprep.subr.mxu0 %v2561
        %2665 = vmatpush1.msra.mxu0 %v2545
        %2666 = vmatprep.subr.mxu0 0.0
        %2667 = vmatpush1.msra.mxu0 0.0
        %2668 = vmatprep.subr.mxu0 0.0
        %2669 = vmatpush1.msra.mxu0 0.0
        %2670 = vmatprep.subr.mxu0 0.0
        %2671 = vmatpush1.msra.mxu0 0.0
        %2672 = vmatprep.subr.mxu0 0.0
        %2673 = vmatpush1.msra.mxu0 0.0
        %2674 = vmatprep.subr.mxu0 0.0
        %2675 = vmatpush1.msra.mxu0 0.0
        %2676 = vmatprep.subr.mxu0 0.0
        %2677 = vmatpush1.msra.mxu0 0.0
        %2678 = vmatprep.subr.mxu0 0.0
        %2679 = vmatpush1.msra.mxu0 0.0
        %2680 = vmatprep.subr.mxu0 0.0
        %2681 = vmatpush1.msra.mxu0 0.0
        %2682 = vmatprep.subr.mxu0 0.0
        %2683 = vmatpush1.msra.mxu0 0.0
        %2684 = vmatprep.subr.mxu0 0.0
        %2685 = vmatpush1.msra.mxu0 0.0
        %2686 = vmatprep.subr.mxu0 0.0
        %2687 = vmatpush1.msra.mxu0 0.0
        %2688 = vmatprep.subr.mxu0 0.0
        %2689 = vmatpush1.msra.mxu0 0.0
        %2690 = vmatprep.subr.mxu0 0.0
        %2691 = vmatpush1.msra.mxu0 0.0
        %2692 = vmatprep.subr.mxu0 0.0
        %2693 = vmatpush1.msra.mxu0 0.0
        %2694 = vmatprep.subr.mxu0 0.0
        %2695 = vmatpush1.msra.mxu0 0.0
        %2696 = vmatprep.subr.mxu0 0.0
        %2697 = vmatpush1.msra.mxu0 0.0
        %2698 = vmatprep.mubr.f32.mxu0 0.0
        %2699 = vmatmul.mubr.f32.gmra.mrb[0].mxu0 %v2562
        %v2700 = vpop.f32.mrb[0].mxu0
        %v2701 = vadd.f32 0.0, %v2700
        %v2702 = vpop.f32.mrb[0].mxu0
        %v2703 = vadd.f32 0.0, %v2702
        %2704 = vdwg.mxu0
        %v2705 = vmul.f32 %v2630, %v2630
        %v2706 = vmul.f32 %v2632, %v2632
        %v2707 = vmul.f32 %v2701, %v2701
        %v2708 = vmul.f32 %v2703, %v2703
        %v2709 = vadd.f32 %v2706, %v2707
        %v2710 = vadd.f32 %v2709, %v2708
        %vm2711 = vcmask 1041408
        %v2712 = vsel %vm2711, %v2705, %v2710
        %v2713 = vld [vmem:[%s4] sm:$0xf]
        %2715 = vset.pattern.permute.xlu0 0
        %2716 = vperm.xlu0 %2715, %v2713
        %v2717 = vpop.permute.xlu0 %2716
        %v2719 = vmul.f32 %v2712, %v2717
        %2720 = vst [vmem:[%s258] sm:$0xf] %v2719
        %s2721 = sand.u32 %s152, 1
        %s2722 = scalar_lea.sflag [#allocation3], %s2721
        %s2723 = sand.u32 %s152, 1
        %s2724 = smul.addr %s2723, 4
        %s2725 = scalar_lea.vmem [#allocation2], %s2724
        // Predicated region
        $region41: #{tpu_custom_call.1} parent=39 // pred_check
          %p2726 = pneg %p162
        $region42: #{tpu_custom_call.1} parent=39 // pred_check_branch
          %2728 = sbr.rel (%p2726) target = $region44
        $region43: #{tpu_custom_call.1} parent=39 // pred_region
          %s2730 = ssub.s32 64, 64
          %2731 = vsyncadd %s2722, %s2730
          %s2732 = smul.addr %s19, 64
          %s2733 = scalar_lea.hbm %s5, %s2732
          %s2735 = sshll.u32 %s2725, 4
          %s2736 = int_to_ptr.vmem [resolvable:$true] %s2735
          %2738 = dma.vmem_to_hbm [thread:$0]  %s2736, 64, %s2733, %s2722
        $region44: #{tpu_custom_call.1} parent=39 // pred_fallthru
          _
      $region40: #{tpu_custom_call.1} parent=5 // pred_fallthru
        _
      %p2739 = scmp.le.s32.totalorder 2, %s14
      // Predicated region
      $region45: #{tpu_custom_call.1} parent=5 // pred_check
        %p2740 = pneg %p2739
      $region46: #{tpu_custom_call.1} parent=5 // pred_check_branch
        %2742 = sbr.rel (%p2740) target = $region48
      $region47: #{tpu_custom_call.1} parent=5 // pred_region
        %s2743 = ssub.s32 %s14, 2
        // Predicated region
        $region49: #{tpu_custom_call.1} parent=47 // pred_check
          %p2744 = pneg %p168
        $region50: #{tpu_custom_call.1} parent=47 // pred_check_branch
          %2746 = sbr.rel (%p2744) target = $region52
        $region51: #{tpu_custom_call.1} parent=47 // pred_region
          %s2747 = sand.u32 %s153, 1
          %s2748 = scalar_lea.sflag [#allocation3], %s2747
          %s2749 = sand.u32 %s153, 1
          %s2750 = smul.addr %s2749, 4
          %s2751 = scalar_lea.vmem [#allocation2], %s2750
          %2752 = dma.done %s2748, 64
        $region52: #{tpu_custom_call.1} parent=47 // pred_fallthru
          _
      $region48: #{tpu_custom_call.1} parent=5 // pred_fallthru
        _
    $region6: #{tpu_custom_call.1} parent=1 // loop_footer
      %s18 = sadd.s32 1, %s14
    $region7: #{tpu_custom_call.1} parent=1 // loop_footer_branch
      %13 = sbr.rel target = $region3
    $region8: #{tpu_custom_call.1} parent=1 // loop_exit
      _
    %2753 = vsyncpa [#allocation3], 1
    %s2754 = scalar_lea.sflag [#allocation3], 1
    %2755 = vsyncpa %s2754, 1

</llo_original>
